<compile_context>
chip_gen: v5e
topology: v5e:2x2
jax: 0.10.0
libtpu: 0.0.40
codegen_flags: <defaults>
</compile_context>

<pallas_src>
import functools

import jax
import jax.numpy as jnp
import numpy as np
from jax.experimental import pallas as pl
from jax.experimental.pallas import tpu as pltpu


def _round_up(x, m):
    return (x + m - 1) // m * m


# ----------------------------------------------------------------------------
# Fused per-layer kernel body (grid axis 0 = layer index).
#   scalar prefetch : tok_ref   SMEM [B_p] int32
#   inputs          : emb_hbm   HBM  [V, IN_P] f32 (memory_space=pl.ANY)
#                     h_in/c_in VMEM [1, B_p, H_p] f32 (this layer's slab)
#                     w_ref     VMEM [1, IN_P+H_p, 4*H_p]   fused [w_ih; w_hh]
#                     b_ref     VMEM [1, 1, 4*H_p] f32
#                     fcw_ref   VMEM [H_p, O_p], fcb_ref [1, O_p]
#   outputs         : pred [B_p, O_p], h_out/c_out [1, B_p, H_p]
#   scratch         : x_ref VMEM [B_p, IN_P] (x carried layer->layer),
#                     gather_sem DMA sems [B_p]
# ----------------------------------------------------------------------------
def decoder_step_kernel(tok_ref, emb_hbm, h_in_ref, c_in_ref, w_ref, b_ref,
                        fcw_ref, fcb_ref,
                        pred_ref, h_out_ref, c_out_ref,
                        x_ref, gather_sem):
    l = pl.program_id(0)
    last = pl.num_programs(0) - 1
    batch_p = x_ref.shape[0]
    H = h_in_ref.shape[2]

    # ---- layer 0: gather embedding rows HBM -> VMEM x-carry buffer (exact f32) ----
    @pl.when(l == 0)
    def _():
        for bi in range(batch_p):
            pltpu.make_async_copy(
                emb_hbm.at[pl.ds(tok_ref[bi], 1), :],
                x_ref.at[pl.ds(bi, 1), :],
                gather_sem.at[bi]).start()
        for bi in range(batch_p):
            pltpu.make_async_copy(
                emb_hbm.at[pl.ds(tok_ref[bi], 1), :],
                x_ref.at[pl.ds(bi, 1), :],
                gather_sem.at[bi]).wait()
        # dropout(embedded) == identity in eval mode.

    h = h_in_ref[0]                                           # [B_p, H_p]
    c = c_in_ref[0]
    w = w_ref[0]                                              # [IN_P+H_p, 4H_p]

    # Single fused gate matmul: gates = [x, h] @ [w_ih; w_hh] + (b_ih + b_hh)
    xh = jnp.concatenate([x_ref[...], h], axis=-1)            # [B_p, IN_P+H_p]
    gates = jnp.dot(xh.astype(w.dtype), w,
                    preferred_element_type=jnp.float32) + b_ref[0]

    # 128-lane aligned gate slices (each gate block padded to H_p at pack time)
    i_g = jax.nn.sigmoid(gates[:, 0 * H:1 * H])
    f_g = jax.nn.sigmoid(gates[:, 1 * H:2 * H])
    g_g = jnp.tanh(gates[:, 2 * H:3 * H])
    o_g = jax.nn.sigmoid(gates[:, 3 * H:4 * H])

    c_new = f_g * c + i_g * g_g
    h_new = o_g * jnp.tanh(c_new)

    h_out_ref[0] = h_new
    c_out_ref[0] = c_new
    # carry x to next layer (stale cols [H:IN_P] only ever hit zero-padded w_ih rows)
    x_ref[:, 0:H] = h_new

    # ---- last layer: fc_out -----------------------------------------------------
    @pl.when(l == last)
    def _():
        fcw = fcw_ref[...]
        pred_ref[...] = (jnp.dot(h_new.astype(fcw.dtype), fcw,
                                 preferred_element_type=jnp.float32)
                         + fcb_ref[...]).astype(pred_ref.dtype)


# ----------------------------------------------------------------------------
# Parameter init (logical / unpadded, PyTorch-like but transposed: [in, out])
# ----------------------------------------------------------------------------
def init_decoder_params(key, output_dim, emb_dim, hid_dim, n_layers):
    params = {}
    k = jax.random.split(key, 2 + 4 * n_layers + 2)
    scale = 1.0 / jnp.sqrt(hid_dim)
    params["embedding"] = jax.random.normal(k[0], (output_dim, emb_dim), jnp.float32)
    idx = 1
    for l in range(n_layers):
        in_dim = emb_dim if l == 0 else hid_dim
        params[f"w_ih_{l}"] = jax.random.uniform(
            k[idx], (in_dim, 4 * hid_dim), jnp.float32, -scale, scale); idx += 1
        params[f"w_hh_{l}"] = jax.random.uniform(
            k[idx], (hid_dim, 4 * hid_dim), jnp.float32, -scale, scale); idx += 1
        b_ih = jax.random.uniform(
            k[idx], (1, 4 * hid_dim), jnp.float32, -scale, scale); idx += 1
        b_hh = jax.random.uniform(
            k[idx], (1, 4 * hid_dim), jnp.float32, -scale, scale); idx += 1
        params[f"b_{l}"] = b_ih + b_hh
    params["fc_w"] = jax.random.uniform(
        k[idx], (hid_dim, output_dim), jnp.float32, -scale, scale); idx += 1
    params["fc_b"] = jax.random.uniform(
        k[idx], (1, output_dim), jnp.float32, -scale, scale)
    return params


# ----------------------------------------------------------------------------
# Pack/pad params once (NOT per decode step):
#   * pad every gate block to H_p so (i,f,g,o) stays 128-lane aligned
#   * fuse [w_ih; w_hh] along rows -> one matmul per layer
#   * embedding padded only on the feature dim (rows stay V, gathered from HBM)
#   * optional bf16 weight storage (MXU inputs only)
# ----------------------------------------------------------------------------
def pack_decoder_params(params, output_dim, emb_dim, hid_dim, n_layers,
                        use_bf16_matmul=False):
    E_p = _round_up(emb_dim, 128)
    H_p = _round_up(hid_dim, 128)
    IN_P = max(E_p, H_p)
    O_p = _round_up(output_dim, 128)
    w_dtype = jnp.bfloat16 if use_bf16_matmul else jnp.float32

    def pad_gates(w, rows_p):
        rows = w.shape[0]
        w4 = w.reshape(rows, 4, hid_dim)
        w4 = jnp.pad(w4, ((0, rows_p - rows), (0, 0), (0, H_p - hid_dim)))
        return w4.reshape(rows_p, 4 * H_p)

    w_cat = jnp.stack([
        jnp.concatenate([pad_gates(params[f"w_ih_{l}"], IN_P),
                         pad_gates(params[f"w_hh_{l}"], H_p)], axis=0)
        for l in range(n_layers)]).astype(w_dtype)            # [L, IN_P+H_p, 4H_p]
    b = jnp.stack([pad_gates(params[f"b_{l}"], 1)
                   for l in range(n_layers)])                 # [L, 1, 4H_p] f32
    emb = jnp.pad(params["embedding"],
                  ((0, 0), (0, IN_P - emb_dim)))              # [V, IN_P] f32 (exact gather)
    fc_w = jnp.pad(params["fc_w"],
                   ((0, H_p - hid_dim), (0, O_p - output_dim))).astype(w_dtype)
    fc_b = jnp.pad(params["fc_b"], ((0, 0), (0, O_p - output_dim)))
    return dict(embedding=emb, w_cat=w_cat, b=b, fc_w=fc_w, fc_b=fc_b)


def pad_state(hidden, cell):
    """Pad [L,B,H] recurrent state to [L,B_p,H_p] ONCE; it stays padded across steps."""
    L, B, H = hidden.shape
    H_p = _round_up(H, 128)
    B_p = max(_round_up(B, 8), 8)
    h_pad = jnp.zeros((L, B_p, H_p), jnp.float32).at[:, :B, :H].set(hidden)
    c_pad = jnp.zeros((L, B_p, H_p), jnp.float32).at[:, :B, :H].set(cell)
    return h_pad, c_pad


def unpad_state(h_pad, c_pad, batch, hid_dim):
    return h_pad[:, :batch, :hid_dim], c_pad[:, :batch, :hid_dim]


def _vmem_limit_bytes(batch_p, hid_p, in_p, out_p, w_itemsize):
    w_block = (in_p + hid_p) * 4 * hid_p * w_itemsize          # one fused layer weight block
    state_block = batch_p * hid_p * 4                          # one h or c block (f32)
    resident = (2 * w_block                                    # double-buffered weights
                + 2 * 4 * hid_p * 4                            # bias blocks (dbl-buffered)
                + 8 * state_block                              # h/c in+out, dbl-buffered
                + hid_p * out_p * w_itemsize                   # fc_out weight (resident)
                + (1 + batch_p) * out_p * 4                    # fc_b + prediction block
                + batch_p * in_p * 4)                          # x carry scratch
    return int(min(100 * 1024 * 1024, resident + (8 << 20)))


# ----------------------------------------------------------------------------
# One decode step.  Recurrent state stays in padded [L, B_p, H_p] layout and is
# aliased in place; only the prediction is sliced back to logical shape.
# (For a real autoregressive loop, also pass donate_argnums=(2, 3) to jax.jit.)
# ----------------------------------------------------------------------------
@functools.partial(jax.jit, static_argnames=("output_dim",))
def decoder_step(packed, tokens, h_pad, c_pad, *, output_dim):
    L, B_p, H_p = h_pad.shape
    V, IN_P = packed["embedding"].shape
    O_p = packed["fc_w"].shape[1]
    B = tokens.shape[0]
    w_itemsize = jnp.dtype(packed["w_cat"].dtype).itemsize

    tok_p = jnp.zeros((B_p,), jnp.int32).at[:B].set(tokens.astype(jnp.int32))

    grid_spec = pltpu.PrefetchScalarGridSpec(
        num_scalar_prefetch=1,
        grid=(L,),
        in_specs=[
            pl.BlockSpec(memory_space=pl.ANY),                                 # embedding (HBM)
            pl.BlockSpec((1, B_p, H_p), lambda l, tok: (l, 0, 0)),             # h_in
            pl.BlockSpec((1, B_p, H_p), lambda l, tok: (l, 0, 0)),             # c_in
            pl.BlockSpec((1, IN_P + H_p, 4 * H_p), lambda l, tok: (l, 0, 0)),  # w_cat
            pl.BlockSpec((1, 1, 4 * H_p), lambda l, tok: (l, 0, 0)),           # bias
            pl.BlockSpec((H_p, O_p), lambda l, tok: (0, 0)),                   # fc_w (resident)
            pl.BlockSpec((1, O_p), lambda l, tok: (0, 0)),                     # fc_b
        ],
        out_specs=[
            pl.BlockSpec((B_p, O_p), lambda l, tok: (0, 0)),                   # prediction
            pl.BlockSpec((1, B_p, H_p), lambda l, tok: (l, 0, 0)),             # h_out
            pl.BlockSpec((1, B_p, H_p), lambda l, tok: (l, 0, 0)),             # c_out
        ],
        scratch_shapes=[
            pltpu.VMEM((B_p, IN_P), jnp.float32),      # x carried layer -> layer
            pltpu.SemaphoreType.DMA((B_p,)),           # embedding-gather semaphores
        ],
    )

    pred_p, h_out, c_out = pl.pallas_call(
        decoder_step_kernel,
        grid_spec=grid_spec,
        out_shape=(jax.ShapeDtypeStruct((B_p, O_p), jnp.float32),
                   jax.ShapeDtypeStruct((L, B_p, H_p), jnp.float32),
                   jax.ShapeDtypeStruct((L, B_p, H_p), jnp.float32)),
        # flat input indices incl. scalar prefetch: 0 tok, 1 emb, 2 h_pad, 3 c_pad, ...
        input_output_aliases={2: 1, 3: 2},
        compiler_params=pltpu.CompilerParams(
            dimension_semantics=("arbitrary",),
            vmem_limit_bytes=_vmem_limit_bytes(B_p, H_p, IN_P, O_p, w_itemsize),
        ),
    )(tok_p, packed["embedding"], h_pad, c_pad,
      packed["w_cat"], packed["b"], packed["fc_w"], packed["fc_b"])

    return pred_p[:B, :output_dim], h_out, c_out


# ----------------------------------------------------------------------------
# Pure-JAX reference (for correctness check)
# ----------------------------------------------------------------------------
def decoder_reference(params, tokens, hidden, cell, n_layers):
    hi = jax.lax.Precision.HIGHEST
    x = jnp.take(params["embedding"], tokens, axis=0)
    new_h, new_c = [], []
    for l in range(n_layers):
        h, c = hidden[l], cell[l]
        gates = (jnp.dot(x, params[f"w_ih_{l}"], precision=hi)
                 + jnp.dot(h, params[f"w_hh_{l}"], precision=hi)
                 + params[f"b_{l}"])
        H = h.shape[-1]
        i_g = jax.nn.sigmoid(gates[:, 0 * H:1 * H])
        f_g = jax.nn.sigmoid(gates[:, 1 * H:2 * H])
        g_g = jnp.tanh(gates[:, 2 * H:3 * H])
        o_g = jax.nn.sigmoid(gates[:, 3 * H:4 * H])
        c = f_g * c + i_g * g_g
        h = o_g * jnp.tanh(c)
        new_h.append(h)
        new_c.append(c)
        x = h
    pred = jnp.dot(x, params["fc_w"], precision=hi) + params["fc_b"]
    return pred, jnp.stack(new_h, axis=0), jnp.stack(new_c, axis=0)


if __name__ == "__main__":
    OUTPUT_DIM = 16   # target vocab size
    EMB_DIM = 32
    HID_DIM = 32
    N_LAYERS = 2
    BATCH = 2

    key = jax.random.PRNGKey(0)
    k_par, k_tok, k_h, k_c = jax.random.split(key, 4)

    params = init_decoder_params(k_par, OUTPUT_DIM, EMB_DIM, HID_DIM, N_LAYERS)
    packed = pack_decoder_params(params, OUTPUT_DIM, EMB_DIM, HID_DIM, N_LAYERS)

    tokens = jax.random.randint(k_tok, (BATCH,), 0, OUTPUT_DIM, dtype=jnp.int32)
    hidden = jax.random.normal(k_h, (N_LAYERS, BATCH, HID_DIM), jnp.float32)
    cell = jax.random.normal(k_c, (N_LAYERS, BATCH, HID_DIM), jnp.float32)

    # Pad recurrent state once; it stays padded across decode steps.
    h_pad, c_pad = pad_state(hidden, cell)
    h_ref, c_ref = hidden, cell
    tok = tokens

    for step in range(2):   # two autoregressive decode steps through the fused kernel
        pred, h_pad, c_pad = decoder_step(packed, tok, h_pad, c_pad,
                                          output_dim=OUTPUT_DIM)
        jax.block_until_ready((pred, h_pad, c_pad))

        assert pred.shape == (BATCH, OUTPUT_DIM)
        assert h_pad.shape[0] == N_LAYERS and c_pad.shape[0] == N_LAYERS

        pred_r, h_ref, c_ref = decoder_reference(params, tok, h_ref, c_ref, N_LAYERS)
        np.testing.assert_allclose(np.asarray(pred), np.asarray(pred_r),
                                   rtol=1e-4, atol=1e-4)
        h_out, c_out = unpad_state(h_pad, c_pad, BATCH, HID_DIM)
        np.testing.assert_allclose(np.asarray(h_out), np.asarray(h_ref),
                                   rtol=1e-4, atol=1e-4)
        np.testing.assert_allclose(np.asarray(c_out), np.asarray(c_ref),
                                   rtol=1e-4, atol=1e-4)

        # greedy next token, fed back into both kernel and reference next step
        tok = jnp.argmax(pred, axis=-1).astype(jnp.int32)

    print("KERNEL_OK")
</pallas_src>

<mosaic_0001>
module attributes {stable_mosaic.version = 11 : i64} {
  func.func @decoder_step_kernel(%arg0: i32, %arg1: memref<8xi32, #tpu.memory_space<smem>>, %arg2: memref<16x128xf32, #tpu.memory_space<any>>, %arg3: memref<1x8x128xf32, #tpu.memory_space<vmem>>, %arg4: memref<1x8x128xf32, #tpu.memory_space<vmem>>, %arg5: memref<1x256x512xf32, #tpu.memory_space<vmem>>, %arg6: memref<1x1x512xf32, #tpu.memory_space<vmem>>, %arg7: memref<128x128xf32, #tpu.memory_space<vmem>>, %arg8: memref<1x128xf32, #tpu.memory_space<vmem>>, %arg9: memref<8x128xf32, #tpu.memory_space<vmem>>, %arg10: memref<1x8x128xf32, #tpu.memory_space<vmem>>, %arg11: memref<1x8x128xf32, #tpu.memory_space<vmem>>, %arg12: memref<8x128xf32, #tpu.memory_space<vmem>>, %arg13: memref<8x!tpu.dma_semaphore, #tpu.memory_space<semaphore_mem>>) attributes {dimension_semantics = [#tpu.dimension_semantics<arbitrary>], iteration_bounds = array<i64: 2>, scalar_prefetch = 1 : i64, scratch_operands = 2 : i64, tpu.core_type = #tpu.core_type<tc>, window_params = [{}, {transform_indices = @transform_1, window_bounds = array<i64: 1, 8, 128>}, {transform_indices = @transform_2, window_bounds = array<i64: 1, 8, 128>}, {transform_indices = @transform_3, window_bounds = array<i64: 1, 256, 512>}, {transform_indices = @transform_4, window_bounds = array<i64: 1, 1, 512>}, {pipeline_mode = #tpu.pipeline_mode<synchronous>, transform_indices = @transform_5, window_bounds = array<i64: 128, 128>}, {pipeline_mode = #tpu.pipeline_mode<synchronous>, transform_indices = @transform_6, window_bounds = array<i64: 1, 128>}, {pipeline_mode = #tpu.pipeline_mode<synchronous>, transform_indices = @transform_7, window_bounds = array<i64: 8, 128>}, {transform_indices = @transform_8, window_bounds = array<i64: 1, 8, 128>}, {transform_indices = @transform_9, window_bounds = array<i64: 1, 8, 128>}]} {
    %c0_i32 = arith.constant 0 : i32
    %0 = arith.cmpi eq, %arg0, %c0_i32 : i32
    %1 = arith.extui %0 : i1 to i32
    %c0_i32_0 = arith.constant 0 : i32
    %2 = arith.cmpi ne, %1, %c0_i32_0 : i32
    scf.if %2 {
      %c0_26 = arith.constant 0 : index
      %51 = memref.load %arg1[%c0_26] : memref<8xi32, #tpu.memory_space<smem>>
      %c0_i32_27 = arith.constant 0 : i32
      %c0_i32_28 = arith.constant 0 : i32
      %52 = tpu.memref_slice %arg2[%51, %c0_i32_28] : memref<16x128xf32, #tpu.memory_space<any>> -> memref<1x128xf32, #tpu.memory_space<any>>
      %c0_i32_29 = arith.constant 0 : i32
      %c0_i32_30 = arith.constant 0 : i32
      %53 = tpu.memref_slice %arg12[%c0_i32_29, %c0_i32_30] : memref<8x128xf32, #tpu.memory_space<vmem>> -> memref<1x128xf32, #tpu.memory_space<vmem>>
      %54 = tpu.memref_slice %arg13[%c0_i32_27] : memref<8x!tpu.dma_semaphore, #tpu.memory_space<semaphore_mem>> -> memref<1x!tpu.dma_semaphore, #tpu.memory_space<semaphore_mem>>
      %55 = tpu.memref_squeeze %54 : memref<1x!tpu.dma_semaphore, #tpu.memory_space<semaphore_mem>> -> memref<!tpu.dma_semaphore, #tpu.memory_space<semaphore_mem>>
      tpu.enqueue_dma source(%52 : memref<1x128xf32, #tpu.memory_space<any>>) target(%53 : memref<1x128xf32, #tpu.memory_space<vmem>>) target_semaphore(%55 : memref<!tpu.dma_semaphore, #tpu.memory_space<semaphore_mem>>)
      %c1 = arith.constant 1 : index
      %56 = memref.load %arg1[%c1] : memref<8xi32, #tpu.memory_space<smem>>
      %c1_i32_31 = arith.constant 1 : i32
      %c0_i32_32 = arith.constant 0 : i32
      %57 = tpu.memref_slice %arg2[%56, %c0_i32_32] : memref<16x128xf32, #tpu.memory_space<any>> -> memref<1x128xf32, #tpu.memory_space<any>>
      %c1_i32_33 = arith.constant 1 : i32
      %c0_i32_34 = arith.constant 0 : i32
      %58 = tpu.memref_slice %arg12[%c1_i32_33, %c0_i32_34] : memref<8x128xf32, #tpu.memory_space<vmem>> -> memref<1x128xf32, #tpu.memory_space<vmem>>
      %59 = tpu.memref_slice %arg13[%c1_i32_31] : memref<8x!tpu.dma_semaphore, #tpu.memory_space<semaphore_mem>> -> memref<1x!tpu.dma_semaphore, #tpu.memory_space<semaphore_mem>>
      %60 = tpu.memref_squeeze %59 : memref<1x!tpu.dma_semaphore, #tpu.memory_space<semaphore_mem>> -> memref<!tpu.dma_semaphore, #tpu.memory_space<semaphore_mem>>
      tpu.enqueue_dma source(%57 : memref<1x128xf32, #tpu.memory_space<any>>) target(%58 : memref<1x128xf32, #tpu.memory_space<vmem>>) target_semaphore(%60 : memref<!tpu.dma_semaphore, #tpu.memory_space<semaphore_mem>>)
      %c2 = arith.constant 2 : index
      %61 = memref.load %arg1[%c2] : memref<8xi32, #tpu.memory_space<smem>>
      %c2_i32 = arith.constant 2 : i32
      %c0_i32_35 = arith.constant 0 : i32
      %62 = tpu.memref_slice %arg2[%61, %c0_i32_35] : memref<16x128xf32, #tpu.memory_space<any>> -> memref<1x128xf32, #tpu.memory_space<any>>
      %c2_i32_36 = arith.constant 2 : i32
      %c0_i32_37 = arith.constant 0 : i32
      %63 = tpu.memref_slice %arg12[%c2_i32_36, %c0_i32_37] : memref<8x128xf32, #tpu.memory_space<vmem>> -> memref<1x128xf32, #tpu.memory_space<vmem>>
      %64 = tpu.memref_slice %arg13[%c2_i32] : memref<8x!tpu.dma_semaphore, #tpu.memory_space<semaphore_mem>> -> memref<1x!tpu.dma_semaphore, #tpu.memory_space<semaphore_mem>>
      %65 = tpu.memref_squeeze %64 : memref<1x!tpu.dma_semaphore, #tpu.memory_space<semaphore_mem>> -> memref<!tpu.dma_semaphore, #tpu.memory_space<semaphore_mem>>
      tpu.enqueue_dma source(%62 : memref<1x128xf32, #tpu.memory_space<any>>) target(%63 : memref<1x128xf32, #tpu.memory_space<vmem>>) target_semaphore(%65 : memref<!tpu.dma_semaphore, #tpu.memory_space<semaphore_mem>>)
      %c3 = arith.constant 3 : index
      %66 = memref.load %arg1[%c3] : memref<8xi32, #tpu.memory_space<smem>>
      %c3_i32 = arith.constant 3 : i32
      %c0_i32_38 = arith.constant 0 : i32
      %67 = tpu.memref_slice %arg2[%66, %c0_i32_38] : memref<16x128xf32, #tpu.memory_space<any>> -> memref<1x128xf32, #tpu.memory_space<any>>
      %c3_i32_39 = arith.constant 3 : i32
      %c0_i32_40 = arith.constant 0 : i32
      %68 = tpu.memref_slice %arg12[%c3_i32_39, %c0_i32_40] : memref<8x128xf32, #tpu.memory_space<vmem>> -> memref<1x128xf32, #tpu.memory_space<vmem>>
      %69 = tpu.memref_slice %arg13[%c3_i32] : memref<8x!tpu.dma_semaphore, #tpu.memory_space<semaphore_mem>> -> memref<1x!tpu.dma_semaphore, #tpu.memory_space<semaphore_mem>>
      %70 = tpu.memref_squeeze %69 : memref<1x!tpu.dma_semaphore, #tpu.memory_space<semaphore_mem>> -> memref<!tpu.dma_semaphore, #tpu.memory_space<semaphore_mem>>
      tpu.enqueue_dma source(%67 : memref<1x128xf32, #tpu.memory_space<any>>) target(%68 : memref<1x128xf32, #tpu.memory_space<vmem>>) target_semaphore(%70 : memref<!tpu.dma_semaphore, #tpu.memory_space<semaphore_mem>>)
      %c4 = arith.constant 4 : index
      %71 = memref.load %arg1[%c4] : memref<8xi32, #tpu.memory_space<smem>>
      %c4_i32 = arith.constant 4 : i32
      %c0_i32_41 = arith.constant 0 : i32
      %72 = tpu.memref_slice %arg2[%71, %c0_i32_41] : memref<16x128xf32, #tpu.memory_space<any>> -> memref<1x128xf32, #tpu.memory_space<any>>
      %c4_i32_42 = arith.constant 4 : i32
      %c0_i32_43 = arith.constant 0 : i32
      %73 = tpu.memref_slice %arg12[%c4_i32_42, %c0_i32_43] : memref<8x128xf32, #tpu.memory_space<vmem>> -> memref<1x128xf32, #tpu.memory_space<vmem>>
      %74 = tpu.memref_slice %arg13[%c4_i32] : memref<8x!tpu.dma_semaphore, #tpu.memory_space<semaphore_mem>> -> memref<1x!tpu.dma_semaphore, #tpu.memory_space<semaphore_mem>>
      %75 = tpu.memref_squeeze %74 : memref<1x!tpu.dma_semaphore, #tpu.memory_space<semaphore_mem>> -> memref<!tpu.dma_semaphore, #tpu.memory_space<semaphore_mem>>
      tpu.enqueue_dma source(%72 : memref<1x128xf32, #tpu.memory_space<any>>) target(%73 : memref<1x128xf32, #tpu.memory_space<vmem>>) target_semaphore(%75 : memref<!tpu.dma_semaphore, #tpu.memory_space<semaphore_mem>>)
      %c5 = arith.constant 5 : index
      %76 = memref.load %arg1[%c5] : memref<8xi32, #tpu.memory_space<smem>>
      %c5_i32 = arith.constant 5 : i32
      %c0_i32_44 = arith.constant 0 : i32
      %77 = tpu.memref_slice %arg2[%76, %c0_i32_44] : memref<16x128xf32, #tpu.memory_space<any>> -> memref<1x128xf32, #tpu.memory_space<any>>
      %c5_i32_45 = arith.constant 5 : i32
      %c0_i32_46 = arith.constant 0 : i32
      %78 = tpu.memref_slice %arg12[%c5_i32_45, %c0_i32_46] : memref<8x128xf32, #tpu.memory_space<vmem>> -> memref<1x128xf32, #tpu.memory_space<vmem>>
      %79 = tpu.memref_slice %arg13[%c5_i32] : memref<8x!tpu.dma_semaphore, #tpu.memory_space<semaphore_mem>> -> memref<1x!tpu.dma_semaphore, #tpu.memory_space<semaphore_mem>>
      %80 = tpu.memref_squeeze %79 : memref<1x!tpu.dma_semaphore, #tpu.memory_space<semaphore_mem>> -> memref<!tpu.dma_semaphore, #tpu.memory_space<semaphore_mem>>
      tpu.enqueue_dma source(%77 : memref<1x128xf32, #tpu.memory_space<any>>) target(%78 : memref<1x128xf32, #tpu.memory_space<vmem>>) target_semaphore(%80 : memref<!tpu.dma_semaphore, #tpu.memory_space<semaphore_mem>>)
      %c6 = arith.constant 6 : index
      %81 = memref.load %arg1[%c6] : memref<8xi32, #tpu.memory_space<smem>>
      %c6_i32 = arith.constant 6 : i32
      %c0_i32_47 = arith.constant 0 : i32
      %82 = tpu.memref_slice %arg2[%81, %c0_i32_47] : memref<16x128xf32, #tpu.memory_space<any>> -> memref<1x128xf32, #tpu.memory_space<any>>
      %c6_i32_48 = arith.constant 6 : i32
      %c0_i32_49 = arith.constant 0 : i32
      %83 = tpu.memref_slice %arg12[%c6_i32_48, %c0_i32_49] : memref<8x128xf32, #tpu.memory_space<vmem>> -> memref<1x128xf32, #tpu.memory_space<vmem>>
      %84 = tpu.memref_slice %arg13[%c6_i32] : memref<8x!tpu.dma_semaphore, #tpu.memory_space<semaphore_mem>> -> memref<1x!tpu.dma_semaphore, #tpu.memory_space<semaphore_mem>>
      %85 = tpu.memref_squeeze %84 : memref<1x!tpu.dma_semaphore, #tpu.memory_space<semaphore_mem>> -> memref<!tpu.dma_semaphore, #tpu.memory_space<semaphore_mem>>
      tpu.enqueue_dma source(%82 : memref<1x128xf32, #tpu.memory_space<any>>) target(%83 : memref<1x128xf32, #tpu.memory_space<vmem>>) target_semaphore(%85 : memref<!tpu.dma_semaphore, #tpu.memory_space<semaphore_mem>>)
      %c7 = arith.constant 7 : index
      %86 = memref.load %arg1[%c7] : memref<8xi32, #tpu.memory_space<smem>>
      %c7_i32 = arith.constant 7 : i32
      %c0_i32_50 = arith.constant 0 : i32
      %87 = tpu.memref_slice %arg2[%86, %c0_i32_50] : memref<16x128xf32, #tpu.memory_space<any>> -> memref<1x128xf32, #tpu.memory_space<any>>
      %c7_i32_51 = arith.constant 7 : i32
      %c0_i32_52 = arith.constant 0 : i32
      %88 = tpu.memref_slice %arg12[%c7_i32_51, %c0_i32_52] : memref<8x128xf32, #tpu.memory_space<vmem>> -> memref<1x128xf32, #tpu.memory_space<vmem>>
      %89 = tpu.memref_slice %arg13[%c7_i32] : memref<8x!tpu.dma_semaphore, #tpu.memory_space<semaphore_mem>> -> memref<1x!tpu.dma_semaphore, #tpu.memory_space<semaphore_mem>>
      %90 = tpu.memref_squeeze %89 : memref<1x!tpu.dma_semaphore, #tpu.memory_space<semaphore_mem>> -> memref<!tpu.dma_semaphore, #tpu.memory_space<semaphore_mem>>
      tpu.enqueue_dma source(%87 : memref<1x128xf32, #tpu.memory_space<any>>) target(%88 : memref<1x128xf32, #tpu.memory_space<vmem>>) target_semaphore(%90 : memref<!tpu.dma_semaphore, #tpu.memory_space<semaphore_mem>>)
      %c0_53 = arith.constant 0 : index
      %91 = memref.load %arg1[%c0_53] : memref<8xi32, #tpu.memory_space<smem>>
      %c0_i32_54 = arith.constant 0 : i32
      %c0_i32_55 = arith.constant 0 : i32
      %92 = tpu.memref_slice %arg2[%91, %c0_i32_55] : memref<16x128xf32, #tpu.memory_space<any>> -> memref<1x128xf32, #tpu.memory_space<any>>
      %c0_i32_56 = arith.constant 0 : i32
      %c0_i32_57 = arith.constant 0 : i32
      %93 = tpu.memref_slice %arg12[%c0_i32_56, %c0_i32_57] : memref<8x128xf32, #tpu.memory_space<vmem>> -> memref<1x128xf32, #tpu.memory_space<vmem>>
      %94 = tpu.memref_slice %arg13[%c0_i32_54] : memref<8x!tpu.dma_semaphore, #tpu.memory_space<semaphore_mem>> -> memref<1x!tpu.dma_semaphore, #tpu.memory_space<semaphore_mem>>
      %95 = tpu.memref_squeeze %94 : memref<1x!tpu.dma_semaphore, #tpu.memory_space<semaphore_mem>> -> memref<!tpu.dma_semaphore, #tpu.memory_space<semaphore_mem>>
      tpu.wait_dma2 semaphore(%95 : memref<!tpu.dma_semaphore, #tpu.memory_space<semaphore_mem>>) src(%92 : memref<1x128xf32, #tpu.memory_space<any>>) dst(%93 : memref<1x128xf32, #tpu.memory_space<vmem>>)
      %c1_58 = arith.constant 1 : index
      %96 = memref.load %arg1[%c1_58] : memref<8xi32, #tpu.memory_space<smem>>
      %c1_i32_59 = arith.constant 1 : i32
      %c0_i32_60 = arith.constant 0 : i32
      %97 = tpu.memref_slice %arg2[%96, %c0_i32_60] : memref<16x128xf32, #tpu.memory_space<any>> -> memref<1x128xf32, #tpu.memory_space<any>>
      %c1_i32_61 = arith.constant 1 : i32
      %c0_i32_62 = arith.constant 0 : i32
      %98 = tpu.memref_slice %arg12[%c1_i32_61, %c0_i32_62] : memref<8x128xf32, #tpu.memory_space<vmem>> -> memref<1x128xf32, #tpu.memory_space<vmem>>
      %99 = tpu.memref_slice %arg13[%c1_i32_59] : memref<8x!tpu.dma_semaphore, #tpu.memory_space<semaphore_mem>> -> memref<1x!tpu.dma_semaphore, #tpu.memory_space<semaphore_mem>>
      %100 = tpu.memref_squeeze %99 : memref<1x!tpu.dma_semaphore, #tpu.memory_space<semaphore_mem>> -> memref<!tpu.dma_semaphore, #tpu.memory_space<semaphore_mem>>
      tpu.wait_dma2 semaphore(%100 : memref<!tpu.dma_semaphore, #tpu.memory_space<semaphore_mem>>) src(%97 : memref<1x128xf32, #tpu.memory_space<any>>) dst(%98 : memref<1x128xf32, #tpu.memory_space<vmem>>)
      %c2_63 = arith.constant 2 : index
      %101 = memref.load %arg1[%c2_63] : memref<8xi32, #tpu.memory_space<smem>>
      %c2_i32_64 = arith.constant 2 : i32
      %c0_i32_65 = arith.constant 0 : i32
      %102 = tpu.memref_slice %arg2[%101, %c0_i32_65] : memref<16x128xf32, #tpu.memory_space<any>> -> memref<1x128xf32, #tpu.memory_space<any>>
      %c2_i32_66 = arith.constant 2 : i32
      %c0_i32_67 = arith.constant 0 : i32
      %103 = tpu.memref_slice %arg12[%c2_i32_66, %c0_i32_67] : memref<8x128xf32, #tpu.memory_space<vmem>> -> memref<1x128xf32, #tpu.memory_space<vmem>>
      %104 = tpu.memref_slice %arg13[%c2_i32_64] : memref<8x!tpu.dma_semaphore, #tpu.memory_space<semaphore_mem>> -> memref<1x!tpu.dma_semaphore, #tpu.memory_space<semaphore_mem>>
      %105 = tpu.memref_squeeze %104 : memref<1x!tpu.dma_semaphore, #tpu.memory_space<semaphore_mem>> -> memref<!tpu.dma_semaphore, #tpu.memory_space<semaphore_mem>>
      tpu.wait_dma2 semaphore(%105 : memref<!tpu.dma_semaphore, #tpu.memory_space<semaphore_mem>>) src(%102 : memref<1x128xf32, #tpu.memory_space<any>>) dst(%103 : memref<1x128xf32, #tpu.memory_space<vmem>>)
      %c3_68 = arith.constant 3 : index
      %106 = memref.load %arg1[%c3_68] : memref<8xi32, #tpu.memory_space<smem>>
      %c3_i32_69 = arith.constant 3 : i32
      %c0_i32_70 = arith.constant 0 : i32
      %107 = tpu.memref_slice %arg2[%106, %c0_i32_70] : memref<16x128xf32, #tpu.memory_space<any>> -> memref<1x128xf32, #tpu.memory_space<any>>
      %c3_i32_71 = arith.constant 3 : i32
      %c0_i32_72 = arith.constant 0 : i32
      %108 = tpu.memref_slice %arg12[%c3_i32_71, %c0_i32_72] : memref<8x128xf32, #tpu.memory_space<vmem>> -> memref<1x128xf32, #tpu.memory_space<vmem>>
      %109 = tpu.memref_slice %arg13[%c3_i32_69] : memref<8x!tpu.dma_semaphore, #tpu.memory_space<semaphore_mem>> -> memref<1x!tpu.dma_semaphore, #tpu.memory_space<semaphore_mem>>
      %110 = tpu.memref_squeeze %109 : memref<1x!tpu.dma_semaphore, #tpu.memory_space<semaphore_mem>> -> memref<!tpu.dma_semaphore, #tpu.memory_space<semaphore_mem>>
      tpu.wait_dma2 semaphore(%110 : memref<!tpu.dma_semaphore, #tpu.memory_space<semaphore_mem>>) src(%107 : memref<1x128xf32, #tpu.memory_space<any>>) dst(%108 : memref<1x128xf32, #tpu.memory_space<vmem>>)
      %c4_73 = arith.constant 4 : index
      %111 = memref.load %arg1[%c4_73] : memref<8xi32, #tpu.memory_space<smem>>
      %c4_i32_74 = arith.constant 4 : i32
      %c0_i32_75 = arith.constant 0 : i32
      %112 = tpu.memref_slice %arg2[%111, %c0_i32_75] : memref<16x128xf32, #tpu.memory_space<any>> -> memref<1x128xf32, #tpu.memory_space<any>>
      %c4_i32_76 = arith.constant 4 : i32
      %c0_i32_77 = arith.constant 0 : i32
      %113 = tpu.memref_slice %arg12[%c4_i32_76, %c0_i32_77] : memref<8x128xf32, #tpu.memory_space<vmem>> -> memref<1x128xf32, #tpu.memory_space<vmem>>
      %114 = tpu.memref_slice %arg13[%c4_i32_74] : memref<8x!tpu.dma_semaphore, #tpu.memory_space<semaphore_mem>> -> memref<1x!tpu.dma_semaphore, #tpu.memory_space<semaphore_mem>>
      %115 = tpu.memref_squeeze %114 : memref<1x!tpu.dma_semaphore, #tpu.memory_space<semaphore_mem>> -> memref<!tpu.dma_semaphore, #tpu.memory_space<semaphore_mem>>
      tpu.wait_dma2 semaphore(%115 : memref<!tpu.dma_semaphore, #tpu.memory_space<semaphore_mem>>) src(%112 : memref<1x128xf32, #tpu.memory_space<any>>) dst(%113 : memref<1x128xf32, #tpu.memory_space<vmem>>)
      %c5_78 = arith.constant 5 : index
      %116 = memref.load %arg1[%c5_78] : memref<8xi32, #tpu.memory_space<smem>>
      %c5_i32_79 = arith.constant 5 : i32
      %c0_i32_80 = arith.constant 0 : i32
      %117 = tpu.memref_slice %arg2[%116, %c0_i32_80] : memref<16x128xf32, #tpu.memory_space<any>> -> memref<1x128xf32, #tpu.memory_space<any>>
      %c5_i32_81 = arith.constant 5 : i32
      %c0_i32_82 = arith.constant 0 : i32
      %118 = tpu.memref_slice %arg12[%c5_i32_81, %c0_i32_82] : memref<8x128xf32, #tpu.memory_space<vmem>> -> memref<1x128xf32, #tpu.memory_space<vmem>>
      %119 = tpu.memref_slice %arg13[%c5_i32_79] : memref<8x!tpu.dma_semaphore, #tpu.memory_space<semaphore_mem>> -> memref<1x!tpu.dma_semaphore, #tpu.memory_space<semaphore_mem>>
      %120 = tpu.memref_squeeze %119 : memref<1x!tpu.dma_semaphore, #tpu.memory_space<semaphore_mem>> -> memref<!tpu.dma_semaphore, #tpu.memory_space<semaphore_mem>>
      tpu.wait_dma2 semaphore(%120 : memref<!tpu.dma_semaphore, #tpu.memory_space<semaphore_mem>>) src(%117 : memref<1x128xf32, #tpu.memory_space<any>>) dst(%118 : memref<1x128xf32, #tpu.memory_space<vmem>>)
      %c6_83 = arith.constant 6 : index
      %121 = memref.load %arg1[%c6_83] : memref<8xi32, #tpu.memory_space<smem>>
      %c6_i32_84 = arith.constant 6 : i32
      %c0_i32_85 = arith.constant 0 : i32
      %122 = tpu.memref_slice %arg2[%121, %c0_i32_85] : memref<16x128xf32, #tpu.memory_space<any>> -> memref<1x128xf32, #tpu.memory_space<any>>
      %c6_i32_86 = arith.constant 6 : i32
      %c0_i32_87 = arith.constant 0 : i32
      %123 = tpu.memref_slice %arg12[%c6_i32_86, %c0_i32_87] : memref<8x128xf32, #tpu.memory_space<vmem>> -> memref<1x128xf32, #tpu.memory_space<vmem>>
      %124 = tpu.memref_slice %arg13[%c6_i32_84] : memref<8x!tpu.dma_semaphore, #tpu.memory_space<semaphore_mem>> -> memref<1x!tpu.dma_semaphore, #tpu.memory_space<semaphore_mem>>
      %125 = tpu.memref_squeeze %124 : memref<1x!tpu.dma_semaphore, #tpu.memory_space<semaphore_mem>> -> memref<!tpu.dma_semaphore, #tpu.memory_space<semaphore_mem>>
      tpu.wait_dma2 semaphore(%125 : memref<!tpu.dma_semaphore, #tpu.memory_space<semaphore_mem>>) src(%122 : memref<1x128xf32, #tpu.memory_space<any>>) dst(%123 : memref<1x128xf32, #tpu.memory_space<vmem>>)
      %c7_88 = arith.constant 7 : index
      %126 = memref.load %arg1[%c7_88] : memref<8xi32, #tpu.memory_space<smem>>
      %c7_i32_89 = arith.constant 7 : i32
      %c0_i32_90 = arith.constant 0 : i32
      %127 = tpu.memref_slice %arg2[%126, %c0_i32_90] : memref<16x128xf32, #tpu.memory_space<any>> -> memref<1x128xf32, #tpu.memory_space<any>>
      %c7_i32_91 = arith.constant 7 : i32
      %c0_i32_92 = arith.constant 0 : i32
      %128 = tpu.memref_slice %arg12[%c7_i32_91, %c0_i32_92] : memref<8x128xf32, #tpu.memory_space<vmem>> -> memref<1x128xf32, #tpu.memory_space<vmem>>
      %129 = tpu.memref_slice %arg13[%c7_i32_89] : memref<8x!tpu.dma_semaphore, #tpu.memory_space<semaphore_mem>> -> memref<1x!tpu.dma_semaphore, #tpu.memory_space<semaphore_mem>>
      %130 = tpu.memref_squeeze %129 : memref<1x!tpu.dma_semaphore, #tpu.memory_space<semaphore_mem>> -> memref<!tpu.dma_semaphore, #tpu.memory_space<semaphore_mem>>
      tpu.wait_dma2 semaphore(%130 : memref<!tpu.dma_semaphore, #tpu.memory_space<semaphore_mem>>) src(%127 : memref<1x128xf32, #tpu.memory_space<any>>) dst(%128 : memref<1x128xf32, #tpu.memory_space<vmem>>)
    } else {
    }
    %c0 = arith.constant 0 : index
    %c0_1 = arith.constant 0 : index
    %c0_2 = arith.constant 0 : index
    %3 = vector.load %arg3[%c0, %c0_1, %c0_2] : memref<1x8x128xf32, #tpu.memory_space<vmem>>, vector<1x8x128xf32>
    %4 = vector.shape_cast %3 : vector<1x8x128xf32> to vector<8x128xf32>
    %c0_3 = arith.constant 0 : index
    %c0_4 = arith.constant 0 : index
    %c0_5 = arith.constant 0 : index
    %5 = vector.load %arg4[%c0_3, %c0_4, %c0_5] : memref<1x8x128xf32, #tpu.memory_space<vmem>>, vector<1x8x128xf32>
    %6 = vector.shape_cast %5 : vector<1x8x128xf32> to vector<8x128xf32>
    %c0_6 = arith.constant 0 : index
    %c0_7 = arith.constant 0 : index
    %c0_8 = arith.constant 0 : index
    %7 = vector.load %arg5[%c0_6, %c0_7, %c0_8] : memref<1x256x512xf32, #tpu.memory_space<vmem>>, vector<1x256x512xf32>
    %8 = vector.shape_cast %7 : vector<1x256x512xf32> to vector<256x512xf32>
    %c0_9 = arith.constant 0 : index
    %c0_10 = arith.constant 0 : index
    %9 = vector.load %arg12[%c0_9, %c0_10] : memref<8x128xf32, #tpu.memory_space<vmem>>, vector<8x128xf32>
    %10 = tpu.concatenate %9, %4 in 1 : vector<8x128xf32>, vector<8x128xf32> -> vector<8x256xf32>
    %cst = arith.constant dense<0.000000e+00> : vector<8x512xf32>
    %11 = tpu.matmul %10, %8, %cst {dimension_numbers = #tpu.dot_dimension_numbers<[1], [0], [0], [1], [0, 0, 1, 1], [], []>} : vector<8x256xf32>, vector<256x512xf32>, vector<8x512xf32> -> vector<8x512xf32>
    %c0_11 = arith.constant 0 : index
    %c0_12 = arith.constant 0 : index
    %c0_13 = arith.constant 0 : index
    %12 = vector.load %arg6[%c0_11, %c0_12, %c0_13] : memref<1x1x512xf32, #tpu.memory_space<vmem>>, vector<1x1x512xf32>
    %13 = vector.shape_cast %12 : vector<1x1x512xf32> to vector<1x512xf32>
    %14 = vector.broadcast %13 : vector<1x512xf32> to vector<8x512xf32>
    %15 = arith.addf %11, %14 : vector<8x512xf32>
    %16 = vector.extract_strided_slice %15 {offsets = [0, 0], sizes = [8, 128], strides = [1, 1]} : vector<8x512xf32> to vector<8x128xf32>
    %17 = arith.negf %16 : vector<8x128xf32>
    %18 = math.exp %17 : vector<8x128xf32>
    %cst_14 = arith.constant 1.000000e+00 : f32
    %19 = vector.broadcast %cst_14 : f32 to vector<8x128xf32>
    %20 = arith.addf %19, %18 : vector<8x128xf32>
    %21 = arith.divf %19, %20 : vector<8x128xf32>
    %22 = vector.extract_strided_slice %15 {offsets = [0, 128], sizes = [8, 128], strides = [1, 1]} : vector<8x512xf32> to vector<8x128xf32>
    %23 = arith.negf %22 : vector<8x128xf32>
    %24 = math.exp %23 : vector<8x128xf32>
    %cst_15 = arith.constant 1.000000e+00 : f32
    %25 = vector.broadcast %cst_15 : f32 to vector<8x128xf32>
    %26 = arith.addf %25, %24 : vector<8x128xf32>
    %27 = arith.divf %25, %26 : vector<8x128xf32>
    %28 = vector.extract_strided_slice %15 {offsets = [0, 256], sizes = [8, 128], strides = [1, 1]} : vector<8x512xf32> to vector<8x128xf32>
    %29 = math.tanh %28 : vector<8x128xf32>
    %30 = vector.extract_strided_slice %15 {offsets = [0, 384], sizes = [8, 128], strides = [1, 1]} : vector<8x512xf32> to vector<8x128xf32>
    %31 = arith.negf %30 : vector<8x128xf32>
    %32 = math.exp %31 : vector<8x128xf32>
    %cst_16 = arith.constant 1.000000e+00 : f32
    %33 = vector.broadcast %cst_16 : f32 to vector<8x128xf32>
    %34 = arith.addf %33, %32 : vector<8x128xf32>
    %35 = arith.divf %33, %34 : vector<8x128xf32>
    %36 = arith.mulf %27, %6 : vector<8x128xf32>
    %37 = arith.mulf %21, %29 : vector<8x128xf32>
    %38 = arith.addf %36, %37 : vector<8x128xf32>
    %39 = math.tanh %38 : vector<8x128xf32>
    %40 = arith.mulf %35, %39 : vector<8x128xf32>
    %c0_17 = arith.constant 0 : index
    %c0_18 = arith.constant 0 : index
    %c0_19 = arith.constant 0 : index
    %41 = vector.load %arg10[%c0_17, %c0_18, %c0_19] : memref<1x8x128xf32, #tpu.memory_space<vmem>>, vector<1x8x128xf32>
    %42 = vector.shape_cast %41 : vector<1x8x128xf32> to vector<8x128xf32>
    %43 = vector.shape_cast %40 : vector<8x128xf32> to vector<1x8x128xf32>
    tpu.vector_store %arg10[%c0_17, %c0_18, %c0_19], %43 {strides = array<i32>} : memref<1x8x128xf32, #tpu.memory_space<vmem>>, vector<1x8x128xf32>,
    %c0_20 = arith.constant 0 : index
    %c0_21 = arith.constant 0 : index
    %c0_22 = arith.constant 0 : index
    %44 = vector.load %arg11[%c0_20, %c0_21, %c0_22] : memref<1x8x128xf32, #tpu.memory_space<vmem>>, vector<1x8x128xf32>
    %45 = vector.shape_cast %44 : vector<1x8x128xf32> to vector<8x128xf32>
    %46 = vector.shape_cast %38 : vector<8x128xf32> to vector<1x8x128xf32>
    tpu.vector_store %arg11[%c0_20, %c0_21, %c0_22], %46 {strides = array<i32>} : memref<1x8x128xf32, #tpu.memory_space<vmem>>, vector<1x8x128xf32>,
    %c0_23 = arith.constant 0 : index
    %c0_24 = arith.constant 0 : index
    %47 = vector.load %arg12[%c0_23, %c0_24] : memref<8x128xf32, #tpu.memory_space<vmem>>, vector<8x128xf32>
    tpu.vector_store %arg12[%c0_23, %c0_24], %40 {strides = array<i32>} : memref<8x128xf32, #tpu.memory_space<vmem>>, vector<8x128xf32>,
    %c1_i32 = arith.constant 1 : i32
    %48 = arith.cmpi eq, %arg0, %c1_i32 : i32
    %49 = arith.extui %48 : i1 to i32
    %c0_i32_25 = arith.constant 0 : i32
    %50 = arith.cmpi ne, %49, %c0_i32_25 : i32
    scf.if %50 {
      %c0_26 = arith.constant 0 : index
      %c0_27 = arith.constant 0 : index
      %51 = vector.load %arg7[%c0_26, %c0_27] : memref<128x128xf32, #tpu.memory_space<vmem>>, vector<128x128xf32>
      %cst_28 = arith.constant dense<0.000000e+00> : vector<8x128xf32>
      %52 = tpu.matmul %40, %51, %cst_28 {dimension_numbers = #tpu.dot_dimension_numbers<[1], [0], [0], [1], [0, 0, 1, 1], [], []>} : vector<8x128xf32>, vector<128x128xf32>, vector<8x128xf32> -> vector<8x128xf32>
      %c0_29 = arith.constant 0 : index
      %c0_30 = arith.constant 0 : index
      %53 = vector.load %arg8[%c0_29, %c0_30] : memref<1x128xf32, #tpu.memory_space<vmem>>, vector<1x128xf32>
      %54 = vector.broadcast %53 : vector<1x128xf32> to vector<8x128xf32>
      %55 = arith.addf %52, %54 : vector<8x128xf32>
      %c0_31 = arith.constant 0 : index
      %c0_32 = arith.constant 0 : index
      %56 = vector.load %arg9[%c0_31, %c0_32] : memref<8x128xf32, #tpu.memory_space<vmem>>, vector<8x128xf32>
      tpu.vector_store %arg9[%c0_31, %c0_32], %55 {strides = array<i32>} : memref<8x128xf32, #tpu.memory_space<vmem>>, vector<8x128xf32>,
    } else {
    }
    return
  }
  func.func @transform_1(%arg0: i32, %arg1: memref<8xi32, #tpu.memory_space<smem>>) -> (i32, i32, i32) {
    %c0_i32 = arith.constant 0 : i32
    %c0_i32_0 = arith.constant 0 : i32
    %c0_i32_1 = arith.constant 0 : i32
    return %arg0, %c0_i32, %c0_i32_0 : i32, i32, i32
  }
  func.func @transform_2(%arg0: i32, %arg1: memref<8xi32, #tpu.memory_space<smem>>) -> (i32, i32, i32) {
    %c0_i32 = arith.constant 0 : i32
    %c0_i32_0 = arith.constant 0 : i32
    %c0_i32_1 = arith.constant 0 : i32
    return %arg0, %c0_i32, %c0_i32_0 : i32, i32, i32
  }
  func.func @transform_3(%arg0: i32, %arg1: memref<8xi32, #tpu.memory_space<smem>>) -> (i32, i32, i32) {
    %c0_i32 = arith.constant 0 : i32
    %c0_i32_0 = arith.constant 0 : i32
    %c0_i32_1 = arith.constant 0 : i32
    return %arg0, %c0_i32, %c0_i32_0 : i32, i32, i32
  }
  func.func @transform_4(%arg0: i32, %arg1: memref<8xi32, #tpu.memory_space<smem>>) -> (i32, i32, i32) {
    %c0_i32 = arith.constant 0 : i32
    %c0_i32_0 = arith.constant 0 : i32
    %c0_i32_1 = arith.constant 0 : i32
    return %arg0, %c0_i32, %c0_i32_0 : i32, i32, i32
  }
  func.func @transform_5(%arg0: i32, %arg1: memref<8xi32, #tpu.memory_space<smem>>) -> (i32, i32) {
    %c0_i32 = arith.constant 0 : i32
    %c0_i32_0 = arith.constant 0 : i32
    %c0_i32_1 = arith.constant 0 : i32
    return %c0_i32, %c0_i32_0 : i32, i32
  }
  func.func @transform_6(%arg0: i32, %arg1: memref<8xi32, #tpu.memory_space<smem>>) -> (i32, i32) {
    %c0_i32 = arith.constant 0 : i32
    %c0_i32_0 = arith.constant 0 : i32
    %c0_i32_1 = arith.constant 0 : i32
    return %c0_i32, %c0_i32_0 : i32, i32
  }
  func.func @transform_7(%arg0: i32, %arg1: memref<8xi32, #tpu.memory_space<smem>>) -> (i32, i32) {
    %c0_i32 = arith.constant 0 : i32
    %c0_i32_0 = arith.constant 0 : i32
    %c0_i32_1 = arith.constant 0 : i32
    return %c0_i32, %c0_i32_0 : i32, i32
  }
  func.func @transform_8(%arg0: i32, %arg1: memref<8xi32, #tpu.memory_space<smem>>) -> (i32, i32, i32) {
    %c0_i32 = arith.constant 0 : i32
    %c0_i32_0 = arith.constant 0 : i32
    %c0_i32_1 = arith.constant 0 : i32
    return %arg0, %c0_i32, %c0_i32_0 : i32, i32, i32
  }
  func.func @transform_9(%arg0: i32, %arg1: memref<8xi32, #tpu.memory_space<smem>>) -> (i32, i32, i32) {
    %c0_i32 = arith.constant 0 : i32
    %c0_i32_0 = arith.constant 0 : i32
    %c0_i32_1 = arith.constant 0 : i32
    return %arg0, %c0_i32, %c0_i32_0 : i32, i32, i32
  }
}

</mosaic_0001>

<llo_original>
// kernel: decoder_step.1
$region0: #{decoder_step.1}
  #allocation0 [shape = 'u32[]', space=smem, size = 0x4, offset = 0x4, fixed_abs, tag = 'smem constant byte address 0x4 - core index']
  #allocation1 [shape = 'u32[72,128]{1,0:T(1,128)}', space=vmem, size = 0x9000, scoped, tag = 'internal scratch']
  #allocation2 [shape = 'f32[8,128]{1,0:T(8,128)}', space=vmem, size = 0x1000, scoped, tag = 'scratch operand']
  #allocation3 [shape = 's32[8]{0}', space=sflag, size = 0x20, scoped, tag = 'scratch operand']
  #allocation4 [shape = 's32[1]{0}', space=sflag, size = 0x4, scoped, tag = 'scoped memory for decoder_step.1']
  #allocation5 [shape = 'u8[512]{0}', space=smem, size = 0x200, scoped, tag = 'prefetched SMEM operand 0']
  #allocation10 [shape = 's32[]', space=sflag, size = 0x4, offset = 0, fixed_abs, tag = 'sflag constant byte address 0x0 - dummy sync flag']
  #allocation11 [shape = 's32[]', space=sflag, size = 0x4, offset = 0, fixed_abs, tag = 'sflag constant byte address 0x0 - dummy sync flag']
  #allocation12 [shape = 's32[]', space=sflag, size = 0x4, offset = 0, fixed_abs, tag = 'sflag constant byte address 0x0 - dummy sync flag']
  #allocation13 [shape = 's32[]', space=sflag, size = 0x4, offset = 0, fixed_abs, tag = 'sflag constant byte address 0x0 - dummy sync flag']
  #allocation14 [shape = 's32[]', space=sflag, size = 0x4, offset = 0, fixed_abs, tag = 'sflag constant byte address 0x0 - dummy sync flag']
  #allocation15 [shape = 's32[]', space=sflag, size = 0x4, offset = 0, fixed_abs, tag = 'sflag constant byte address 0x0 - dummy sync flag']
  #allocation16 [shape = 's32[]', space=sflag, size = 0x4, offset = 0, fixed_abs, tag = 'sflag constant byte address 0x0 - dummy sync flag']
  #allocation17 [shape = 's32[]', space=sflag, size = 0x4, offset = 0, fixed_abs, tag = 'sflag constant byte address 0x0 - dummy sync flag']
  %s0 = inlined_call_operand.vmem [shape: s32[8], index: 0, kind: input, shape index: {}]
  %s1 = inlined_call_operand.vmem [shape: f32[16,128], index: 1, kind: input, shape index: {}]
  %s2 = inlined_call_operand.vmem [shape: f32[2,8,128], index: 2, kind: input, shape index: {}, may-alias: {2,9}]
  %s3 = inlined_call_operand.vmem [shape: f32[2,8,128], index: 3, kind: input, shape index: {}, may-alias: {3,10}]
  %s4 = inlined_call_operand.hbm [shape: f32[2,256,512], index: 4, kind: input, shape index: {}]
  %s5 = inlined_call_operand.vmem [shape: f32[2,1,512], index: 5, kind: input, shape index: {}]
  %s6 = inlined_call_operand.hbm [shape: f32[128,128], index: 6, kind: input, shape index: {}]
  %s7 = inlined_call_operand.vmem [shape: f32[1,128], index: 7, kind: input, shape index: {}]
  %s8 = inlined_call_operand.vmem [shape: f32[8,128], index: 8, kind: output, shape index: {0}]
  %s9 = inlined_call_operand.vmem [shape: f32[2,8,128], index: 9, kind: output, shape index: {1}, may-alias: {2,9}]
  %s10 = inlined_call_operand.vmem [shape: f32[2,8,128], index: 10, kind: output, shape index: {2}, may-alias: {3,10}]
  %11 = xla_tuple %s8, %s9, %s10
  %s12 = sld [smem:[#allocation0]]
  $region329: #{decoder_step.1} parent=0
    _
  %s14 = ssub.s32 1, %s12
  %s15 = scalar_select 0, %s14, %s12
  %s17 = sshll.u32 %s0, 4
  %s18 = int_to_ptr.vmem [resolvable:$true] %s17
  %20 = dma.vmem_to_smem %s18, 16, [#allocation5], [#allocation4]
  %22 = dma.done [#allocation4], 16
  %23 = sfence
  $region1: #{decoder_step.1} parent=0
    #allocation6 [shape = 'u8[1048576]{0}', space=vmem, size = 0x100000, scoped, tag = 'input window, operand 4']
    #allocation7 [shape = 's32[2]{0}', space=sflag, size = 0x8, scoped, tag = 'scoped memory for decoder_step.1']
    #allocation8 [shape = 'u8[65536]{0}', space=vmem, size = 0x10000, scoped, tag = 'input window, operand 6, single buffered']
    #allocation9 [shape = 's32[1]{0}', space=sflag, size = 0x4, scoped, tag = 'scoped memory for decoder_step.1']
    %24 = vsyncpa [#allocation7], 0
    %s25 = scalar_lea.sflag [#allocation7], 1
    %26 = vsyncpa %s25, 0
    %27 = vsyncpa [#allocation9], 0
    loop: start=0, step=1, limit=4
    $region2: #{decoder_step.1} parent=1 // loop_pre_header
      _
    $region3: #{decoder_step.1} parent=1 // loop_header
      %s29 = sphi 0, %s33
      %p30 = scmp.ge.s32.totalorder %s29, 4
      %s39 = sphi 0, %s41
      %s42 = sphi 0, %s39
      %s43 = sphi 0, %s42
      %s59 = sphi 0, %s43
      %s65 = sphi 0, %s67
      %s68 = sphi 0, %s65
      %s69 = sphi 0, %s68
      %s85 = sphi 0, %s69
      %s91 = sphi 0, %s93
      %s94 = sphi 0, %s91
      %s95 = sphi 0, %s94
      %s111 = sphi 0, %s95
      %s117 = sphi 0, %s119
      %s120 = sphi 0, %s117
      %s121 = sphi 0, %s120
      %s137 = sphi 0, %s121
      %s141 = sphi 0, %s141
      %s143 = sphi 0, %s141
      %s144 = sphi 0, %s143
      %s158 = sphi 0, %s144
      %s162 = sphi 0, %s162
      %s164 = sphi 0, %s162
      %s165 = sphi 0, %s164
      %s179 = sphi 0, %s165
      %s183 = sphi 0, %s183
      %s185 = sphi 0, %s183
      %s186 = sphi 0, %s185
      %s200 = sphi 0, %s186
      %s206 = sphi 0, %s208
      %s209 = sphi 0, %s206
      %s210 = sphi 0, %s209
      %s226 = sphi 0, %s210
      %s232 = sphi 0, %s234
      %s235 = sphi 0, %s232
      %s236 = sphi 0, %s235
      %s252 = sphi 0, %s236
    $region4: #{decoder_step.1} parent=1 // loop_header_branch
      %32 = sbr.rel (%p30) target = $region8
    $region5: #{decoder_step.1} parent=1 // loop_body
      %s34 = ssub.s32 %s29, 1
      %s35 = ssub.s32 %s29, 2
      %s36 = sadd.s32 %s29, 1
      %s37 = ssub.s32 %s29, %s36
      %p38 = scmp.eq.s32.totalorder %s37, 0
      %s40 = sadd.s32 %s39, 1
      %s41 = scalar_select %p38, %s39, %s40
      %p44 = pneg %p38
      %p45 = scmp.eq.s32.totalorder %s29, 1
      %p46 = por %p44, %p45
      %p47 = scmp.ne.s32.totalorder %s39, %s42
      %p48 = scmp.eq.s32.totalorder %s29, 0
      %p49 = por %p47, %p48
      %p50 = scmp.ne.s32.totalorder %s39, %s42
      %p51 = scmp.eq.s32.totalorder %s34, 1
      %p52 = por %p50, %p51
      %p53 = scmp.ne.s32.totalorder %s42, %s43
      %p54 = scmp.eq.s32.totalorder %s34, 0
      %p55 = por %p53, %p54
      %p56 = scmp.ne.s32.totalorder %s42, %s43
      %p57 = scmp.eq.s32.totalorder %s35, 1
      %p58 = por %p56, %p57
      %p60 = scmp.ne.s32.totalorder %s43, %s59
      %p61 = scmp.eq.s32.totalorder %s35, 0
      %p62 = por %p60, %p61
      %s63 = ssub.s32 %s29, %s36
      %p64 = scmp.eq.s32.totalorder %s63, 0
      %s66 = sadd.s32 %s65, 1
      %s67 = scalar_select %p64, %s65, %s66
      %p70 = pneg %p64
      %p71 = scmp.eq.s32.totalorder %s29, 1
      %p72 = por %p70, %p71
      %p73 = scmp.ne.s32.totalorder %s65, %s68
      %p74 = scmp.eq.s32.totalorder %s29, 0
      %p75 = por %p73, %p74
      %p76 = scmp.ne.s32.totalorder %s65, %s68
      %p77 = scmp.eq.s32.totalorder %s34, 1
      %p78 = por %p76, %p77
      %p79 = scmp.ne.s32.totalorder %s68, %s69
      %p80 = scmp.eq.s32.totalorder %s34, 0
      %p81 = por %p79, %p80
      %p82 = scmp.ne.s32.totalorder %s68, %s69
      %p83 = scmp.eq.s32.totalorder %s35, 1
      %p84 = por %p82, %p83
      %p86 = scmp.ne.s32.totalorder %s69, %s85
      %p87 = scmp.eq.s32.totalorder %s35, 0
      %p88 = por %p86, %p87
      %s89 = ssub.s32 %s29, %s36
      %p90 = scmp.eq.s32.totalorder %s89, 0
      %s92 = sadd.s32 %s91, 1
      %s93 = scalar_select %p90, %s91, %s92
      %p96 = pneg %p90
      %p97 = scmp.eq.s32.totalorder %s29, 1
      %p98 = por %p96, %p97
      %p99 = scmp.ne.s32.totalorder %s91, %s94
      %p100 = scmp.eq.s32.totalorder %s29, 0
      %p101 = por %p99, %p100
      %p102 = scmp.ne.s32.totalorder %s91, %s94
      %p103 = scmp.eq.s32.totalorder %s34, 1
      %p104 = por %p102, %p103
      %p105 = scmp.ne.s32.totalorder %s94, %s95
      %p106 = scmp.eq.s32.totalorder %s34, 0
      %p107 = por %p105, %p106
      %p108 = scmp.ne.s32.totalorder %s94, %s95
      %p109 = scmp.eq.s32.totalorder %s35, 1
      %p110 = por %p108, %p109
      %p112 = scmp.ne.s32.totalorder %s95, %s111
      %p113 = scmp.eq.s32.totalorder %s35, 0
      %p114 = por %p112, %p113
      %s115 = ssub.s32 %s29, %s36
      %p116 = scmp.eq.s32.totalorder %s115, 0
      %s118 = sadd.s32 %s117, 1
      %s119 = scalar_select %p116, %s117, %s118
      %p122 = pneg %p116
      %p123 = scmp.eq.s32.totalorder %s29, 1
      %p124 = por %p122, %p123
      %p125 = scmp.ne.s32.totalorder %s117, %s120
      %p126 = scmp.eq.s32.totalorder %s29, 0
      %p127 = por %p125, %p126
      %p128 = scmp.ne.s32.totalorder %s117, %s120
      %p129 = scmp.eq.s32.totalorder %s34, 1
      %p130 = por %p128, %p129
      %p131 = scmp.ne.s32.totalorder %s120, %s121
      %p132 = scmp.eq.s32.totalorder %s34, 0
      %p133 = por %p131, %p132
      %p134 = scmp.ne.s32.totalorder %s120, %s121
      %p135 = scmp.eq.s32.totalorder %s35, 1
      %p136 = por %p134, %p135
      %p138 = scmp.ne.s32.totalorder %s121, %s137
      %p139 = scmp.eq.s32.totalorder %s35, 0
      %p140 = por %p138, %p139
      %s142 = sadd.s32 %s141, 1
      %p145 = scmp.eq.s32.totalorder %s29, 1
      %p146 = scmp.ne.s32.totalorder %s141, %s143
      %p147 = scmp.eq.s32.totalorder %s29, 0
      %p148 = por %p146, %p147
      %p149 = scmp.ne.s32.totalorder %s141, %s143
      %p150 = scmp.eq.s32.totalorder %s34, 1
      %p151 = por %p149, %p150
      %p152 = scmp.ne.s32.totalorder %s143, %s144
      %p153 = scmp.eq.s32.totalorder %s34, 0
      %p154 = por %p152, %p153
      %p155 = scmp.ne.s32.totalorder %s143, %s144
      %p156 = scmp.eq.s32.totalorder %s35, 1
      %p157 = por %p155, %p156
      %p159 = scmp.ne.s32.totalorder %s144, %s158
      %p160 = scmp.eq.s32.totalorder %s35, 0
      %p161 = por %p159, %p160
      %s163 = sadd.s32 %s162, 1
      %p166 = scmp.eq.s32.totalorder %s29, 1
      %p167 = scmp.ne.s32.totalorder %s162, %s164
      %p168 = scmp.eq.s32.totalorder %s29, 0
      %p169 = por %p167, %p168
      %p170 = scmp.ne.s32.totalorder %s162, %s164
      %p171 = scmp.eq.s32.totalorder %s34, 1
      %p172 = por %p170, %p171
      %p173 = scmp.ne.s32.totalorder %s164, %s165
      %p174 = scmp.eq.s32.totalorder %s34, 0
      %p175 = por %p173, %p174
      %p176 = scmp.ne.s32.totalorder %s164, %s165
      %p177 = scmp.eq.s32.totalorder %s35, 1
      %p178 = por %p176, %p177
      %p180 = scmp.ne.s32.totalorder %s165, %s179
      %p181 = scmp.eq.s32.totalorder %s35, 0
      %p182 = por %p180, %p181
      %s184 = sadd.s32 %s183, 1
      %p187 = scmp.eq.s32.totalorder %s29, 1
      %p188 = scmp.ne.s32.totalorder %s183, %s185
      %p189 = scmp.eq.s32.totalorder %s29, 0
      %p190 = por %p188, %p189
      %p191 = scmp.ne.s32.totalorder %s183, %s185
      %p192 = scmp.eq.s32.totalorder %s34, 1
      %p193 = por %p191, %p192
      %p194 = scmp.ne.s32.totalorder %s185, %s186
      %p195 = scmp.eq.s32.totalorder %s34, 0
      %p196 = por %p194, %p195
      %p197 = scmp.ne.s32.totalorder %s185, %s186
      %p198 = scmp.eq.s32.totalorder %s35, 1
      %p199 = por %p197, %p198
      %p201 = scmp.ne.s32.totalorder %s186, %s200
      %p202 = scmp.eq.s32.totalorder %s35, 0
      %p203 = por %p201, %p202
      %s204 = ssub.s32 %s29, %s36
      %p205 = scmp.eq.s32.totalorder %s204, 0
      %s207 = sadd.s32 %s206, 1
      %s208 = scalar_select %p205, %s206, %s207
      %p211 = pneg %p205
      %p212 = scmp.eq.s32.totalorder %s29, 1
      %p213 = por %p211, %p212
      %p214 = scmp.ne.s32.totalorder %s206, %s209
      %p215 = scmp.eq.s32.totalorder %s29, 0
      %p216 = por %p214, %p215
      %p217 = scmp.ne.s32.totalorder %s206, %s209
      %p218 = scmp.eq.s32.totalorder %s34, 1
      %p219 = por %p217, %p218
      %p220 = scmp.ne.s32.totalorder %s209, %s210
      %p221 = scmp.eq.s32.totalorder %s34, 0
      %p222 = por %p220, %p221
      %p223 = scmp.ne.s32.totalorder %s209, %s210
      %p224 = scmp.eq.s32.totalorder %s35, 1
      %p225 = por %p223, %p224
      %p227 = scmp.ne.s32.totalorder %s210, %s226
      %p228 = scmp.eq.s32.totalorder %s35, 0
      %p229 = por %p227, %p228
      %s230 = ssub.s32 %s29, %s36
      %p231 = scmp.eq.s32.totalorder %s230, 0
      %s233 = sadd.s32 %s232, 1
      %s234 = scalar_select %p231, %s232, %s233
      %p237 = pneg %p231
      %p238 = scmp.eq.s32.totalorder %s29, 1
      %p239 = por %p237, %p238
      %p240 = scmp.ne.s32.totalorder %s232, %s235
      %p241 = scmp.eq.s32.totalorder %s29, 0
      %p242 = por %p240, %p241
      %p243 = scmp.ne.s32.totalorder %s232, %s235
      %p244 = scmp.eq.s32.totalorder %s34, 1
      %p245 = por %p243, %p244
      %p246 = scmp.ne.s32.totalorder %s235, %s236
      %p247 = scmp.eq.s32.totalorder %s34, 0
      %p248 = por %p246, %p247
      %p249 = scmp.ne.s32.totalorder %s235, %s236
      %p250 = scmp.eq.s32.totalorder %s35, 1
      %p251 = por %p249, %p250
      %p253 = scmp.ne.s32.totalorder %s236, %s252
      %p254 = scmp.eq.s32.totalorder %s35, 0
      %p255 = por %p253, %p254
      %p256 = scmp.le.s32.totalorder 1, %s29
      %p257 = scmp.lt.s32.totalorder %s29, 3
      %p258 = pnand %p256, %p257
      %p259 = pneg %p258
      // Predicated region
      $region9: #{decoder_step.1} parent=5 // pred_check
        _
      $region10: #{decoder_step.1} parent=5 // pred_check_branch
        %261 = sbr.rel (%p258) target = $region12
      $region11: #{decoder_step.1} parent=5 // pred_region
        %s262 = ssub.s32 %s29, 1
        // Predicated region
        $region13: #{decoder_step.1} parent=11 // pred_check
          %p263 = pneg %p154
        $region14: #{decoder_step.1} parent=11 // pred_check_branch
          %265 = sbr.rel (%p263) target = $region16
        $region15: #{decoder_step.1} parent=11 // pred_region
          %267 = vsyncadd [#allocation9], 0
          %s268 = sshll.u32 %s6, 4
          %s269 = int_to_ptr.hbm [resolvable:$true] %s268
          %s270 = sshll.u32 [#allocation8], 4
          %s271 = int_to_ptr.vmem [resolvable:$true] %s270
          %276 = dma.hbm_to_vmem [thread:$0]  %s269, 2048, %s271, [#allocation9], 128, 128, 8
        $region16: #{decoder_step.1} parent=11 // pred_fallthru
          _
        // Predicated region
        $region17: #{decoder_step.1} parent=11 // pred_check
          %p277 = pneg %p175
        $region18: #{decoder_step.1} parent=11 // pred_check_branch
          %279 = sbr.rel (%p277) target = $region20
        $region19: #{decoder_step.1} parent=11 // pred_region
          _
        $region20: #{decoder_step.1} parent=11 // pred_fallthru
          _
      $region12: #{decoder_step.1} parent=5 // pred_fallthru
        _
      %p280 = scmp.lt.s32.totalorder %s29, 2
      // Predicated region
      $region21: #{decoder_step.1} parent=5 // pred_check
        %p281 = pneg %p280
      $region22: #{decoder_step.1} parent=5 // pred_check_branch
        %283 = sbr.rel (%p281) target = $region24
      $region23: #{decoder_step.1} parent=5 // pred_region
        // Predicated region
        $region25: #{decoder_step.1} parent=23 // pred_check
          %p284 = pneg %p49
        $region26: #{decoder_step.1} parent=23 // pred_check_branch
          %286 = sbr.rel (%p284) target = $region28
        $region27: #{decoder_step.1} parent=23 // pred_region
          %p287 = scmp.lt.s32.totalorder %s29, 1
          %s288 = scalar_select %p287, %s29, 1
          %s289 = smul.addr %s288, 8
          %s290 = scalar_lea.vmem %s2, %s289
        $region28: #{decoder_step.1} parent=23 // pred_fallthru
          _
        // Predicated region
        $region29: #{decoder_step.1} parent=23 // pred_check
          %p291 = pneg %p75
        $region30: #{decoder_step.1} parent=23 // pred_check_branch
          %293 = sbr.rel (%p291) target = $region32
        $region31: #{decoder_step.1} parent=23 // pred_region
          %p294 = scmp.lt.s32.totalorder %s29, 1
          %s295 = scalar_select %p294, %s29, 1
          %s296 = smul.addr %s295, 8
          %s297 = scalar_lea.vmem %s3, %s296
        $region32: #{decoder_step.1} parent=23 // pred_fallthru
          _
        // Predicated region
        $region33: #{decoder_step.1} parent=23 // pred_check
          %p298 = pneg %p101
        $region34: #{decoder_step.1} parent=23 // pred_check_branch
          %300 = sbr.rel (%p298) target = $region36
        $region35: #{decoder_step.1} parent=23 // pred_region
          %s301 = sand.u32 %s91, 1
          %s302 = scalar_lea.sflag [#allocation7], %s301
          %s303 = sand.u32 %s91, 1
          %s304 = smul.addr %s303, 1024
          %s305 = scalar_lea.vmem [#allocation6], %s304
          %307 = vsyncadd %s302, 0
          %s308 = smul.addr %s29, 128
          %s309 = smul.addr %s308, 8
          %s310 = scalar_lea.hbm %s4, %s309
          %s311 = sshll.u32 %s310, 4
          %s312 = int_to_ptr.hbm [resolvable:$true] %s311
          %s313 = sshll.u32 %s305, 4
          %s314 = int_to_ptr.vmem [resolvable:$true] %s313
          %319 = dma.hbm_to_vmem [thread:$0]  %s312, 16384, %s314, %s302, 512, 512, 32
        $region36: #{decoder_step.1} parent=23 // pred_fallthru
          _
        // Predicated region
        $region37: #{decoder_step.1} parent=23 // pred_check
          %p320 = pneg %p127
        $region38: #{decoder_step.1} parent=23 // pred_check_branch
          %322 = sbr.rel (%p320) target = $region40
        $region39: #{decoder_step.1} parent=23 // pred_region
          %p323 = scmp.lt.s32.totalorder %s29, 1
          %s324 = scalar_select %p323, %s29, 1
          %s325 = smul.addr %s324, 4
          %s326 = scalar_lea.vmem %s5, %s325
        $region40: #{decoder_step.1} parent=23 // pred_fallthru
          _
      $region24: #{decoder_step.1} parent=5 // pred_fallthru
        _
      %p327 = scmp.le.s32.totalorder 1, %s29
      %p328 = scmp.lt.s32.totalorder %s29, 3
      %p329 = pnand %p327, %p328
      %p330 = pneg %p329
      // Predicated region
      $region41: #{decoder_step.1} parent=5 // pred_check
        _
      $region42: #{decoder_step.1} parent=5 // pred_check_branch
        %332 = sbr.rel (%p329) target = $region44
      $region43: #{decoder_step.1} parent=5 // pred_region
        %s333 = ssub.s32 %s29, 1
        %s334 = sand.u32 %s94, 1
        %s335 = scalar_lea.sflag [#allocation7], %s334
        %s336 = sand.u32 %s94, 1
        %s337 = smul.addr %s336, 1024
        %s338 = scalar_lea.vmem [#allocation6], %s337
        // Predicated region
        $region45: #{decoder_step.1} parent=43 // pred_check
          %p339 = pneg %p107
        $region46: #{decoder_step.1} parent=43 // pred_check_branch
          %341 = sbr.rel (%p339) target = $region48
        $region47: #{decoder_step.1} parent=43 // pred_region
          %343 = dma.done %s335, 16384
        $region48: #{decoder_step.1} parent=43 // pred_fallthru
          _
        // Predicated region
        $region49: #{decoder_step.1} parent=43 // pred_check
          %p344 = pneg %p154
        $region50: #{decoder_step.1} parent=43 // pred_check_branch
          %346 = sbr.rel (%p344) target = $region52
        $region51: #{decoder_step.1} parent=43 // pred_region
          %348 = dma.done [#allocation9], 2048
        $region52: #{decoder_step.1} parent=43 // pred_fallthru
          _
        %p349 = scmp.lt.s32.totalorder %s34, 1
        %s350 = scalar_select %p349, %s34, 1
        %s351 = smul.addr %s350, 8
        %s352 = scalar_lea.vmem %s2, %s351
        %p353 = pneg %p55
        %p354 = pneg %p52
        %p355 = scmp.lt.s32.totalorder %s34, 1
        %s356 = scalar_select %p355, %s34, 1
        %s357 = smul.addr %s356, 8
        %s358 = scalar_lea.vmem %s3, %s357
        %p359 = pneg %p81
        %p360 = pneg %p78
        %s361 = sand.u32 %s94, 1
        %s362 = scalar_lea.sflag [#allocation7], %s361
        %s363 = sand.u32 %s94, 1
        %s364 = smul.addr %s363, 1024
        %s365 = scalar_lea.vmem [#allocation6], %s364
        %p366 = pneg %p107
        %p367 = pneg %p104
        %p368 = scmp.lt.s32.totalorder %s34, 1
        %s369 = scalar_select %p368, %s34, 1
        %s370 = smul.addr %s369, 4
        %s371 = scalar_lea.vmem %s5, %s370
        %p372 = pneg %p133
        %p373 = pneg %p130
        %p374 = pneg %p154
        %p375 = pneg %p151
        %p376 = pneg %p175
        %p377 = pneg %p172
        %p378 = pneg %p196
        %p379 = pneg %p193
        %p380 = pneg %p222
        %p381 = pneg %p219
        %p382 = scmp.lt.s32.totalorder %s34, 1
        %s383 = scalar_select %p382, %s34, 1
        %s384 = smul.addr %s383, 8
        %s385 = scalar_lea.vmem %s9, %s384
        %p386 = pneg %p248
        %p387 = pneg %p245
        %p388 = scmp.lt.s32.totalorder %s34, 1
        %s389 = scalar_select %p388, %s34, 1
        %s390 = smul.addr %s389, 8
        %s391 = scalar_lea.vmem %s10, %s390
        %p392 = scmp.lt.s32.totalorder %s34, 1
        %s393 = scalar_select %p392, %s34, 1
        %s394 = smul.addr %s393, 8
        %s395 = scalar_lea.vmem %s2, %s394
        %p396 = scmp.lt.s32.totalorder %s34, 1
        %s397 = scalar_select %p396, %s34, 1
        %s398 = smul.addr %s397, 8
        %s399 = scalar_lea.vmem %s3, %s398
        %p400 = scmp.lt.s32.totalorder %s34, 1
        %s401 = scalar_select %p400, %s34, 1
        %s402 = smul.addr %s401, 4
        %s403 = scalar_lea.vmem %s5, %s402
        %p404 = scmp.lt.s32.totalorder %s34, 1
        %s405 = scalar_select %p404, %s34, 1
        %s406 = smul.addr %s405, 8
        %s407 = scalar_lea.vmem %s9, %s406
        %p408 = scmp.lt.s32.totalorder %s34, 1
        %s409 = scalar_select %p408, %s34, 1
        %s410 = smul.addr %s409, 8
        %s411 = scalar_lea.vmem %s10, %s410
        %p412 = scmp.eq.s32.totalorder %s34, 0
        // Predicated region
        $region53: #{decoder_step.1} parent=43 // pred_check
          %p413 = pneg %p412
        $region54: #{decoder_step.1} parent=43 // pred_check_branch
          %415 = sbr.rel (%p413) target = $region56
        $region55: #{decoder_step.1} parent=43 // pred_region
          %s416 = sld [smem:[#allocation5]]
          %s417 = scalar_lea.vmem %s1, %s416
          // Predicated region
          $region57: #{decoder_step.1} parent=55 // pred_check
            _
          $region58: #{decoder_step.1} parent=55 // pred_check_branch
            %419 = sbr.rel target = $region60
          $region59: #{decoder_step.1} parent=55 // pred_region
            // Predicated region
            $region72: #{decoder_step.1} parent=59 // pred_check
              _
            $region73: #{decoder_step.1} parent=59 // pred_check_branch
              %435 = sbr.rel (0) target = $region75
            $region74: #{decoder_step.1} parent=59 // pred_region
              %s437 = ssub.s32 2, 1
              loop: start=0, step=1, limit=1
              $region76: #{decoder_step.1} parent=74 // loop_pre_header
                _
              $region77: #{decoder_step.1} parent=74 // loop_header
                %s439 = sphi 0, %s443
                %p440 = scmp.ge.s32.totalorder %s439, 1
                %s444 = sphi %s417, %s417
                %s445 = sphi [#allocation2], [#allocation2]
              $region78: #{decoder_step.1} parent=74 // loop_header_branch
                %442 = sbr.rel (%p440) target = $region82
              $region79: #{decoder_step.1} parent=74 // loop_body
                %v446 = vld [vmem:[%s444] sm:%s437]
                %447 = vst [vmem:[%s445] sm:%s437] %v446
              $region80: #{decoder_step.1} parent=74 // loop_footer
                %s443 = sadd.s32 1, %s439
              $region81: #{decoder_step.1} parent=74 // loop_footer_branch
                %438 = sbr.rel target = $region77
              $region82: #{decoder_step.1} parent=74 // loop_exit
                _
            $region75: #{decoder_step.1} parent=59 // pred_fallthru
              _
          $region60: #{decoder_step.1} parent=55 // pred_fallthru
            _
          // Predicated region
          $region61: #{decoder_step.1} parent=55 // pred_check
            _
          $region62: #{decoder_step.1} parent=55 // pred_check_branch
            %421 = sbr.rel (0) target = $region64
          $region63: #{decoder_step.1} parent=55 // pred_region
            %s423 = ssub.s32 2, 1
            loop: start=0, step=1, limit=1
            $region65: #{decoder_step.1} parent=63 // loop_pre_header
              _
            $region66: #{decoder_step.1} parent=63 // loop_header
              %s425 = sphi 0, %s429
              %p426 = scmp.ge.s32.totalorder %s425, 1
              %s430 = sphi %s417, %s417
              %s431 = sphi [#allocation2], [#allocation2]
            $region67: #{decoder_step.1} parent=63 // loop_header_branch
              %428 = sbr.rel (%p426) target = $region71
            $region68: #{decoder_step.1} parent=63 // loop_body
              %v432 = vld [vmem:[%s430] sm:%s423]
              %433 = vst [vmem:[%s431] sm:%s423] %v432
            $region69: #{decoder_step.1} parent=63 // loop_footer
              %s429 = sadd.s32 1, %s425
            $region70: #{decoder_step.1} parent=63 // loop_footer_branch
              %424 = sbr.rel target = $region66
            $region71: #{decoder_step.1} parent=63 // loop_exit
              _
          $region64: #{decoder_step.1} parent=55 // pred_fallthru
            _
          // Predicated region
          $region83: #{decoder_step.1} parent=55 // pred_check
            _
          $region84: #{decoder_step.1} parent=55 // pred_check_branch
            %450 = sbr.rel (0) target = $region86
          $region85: #{decoder_step.1} parent=55 // pred_region
            %451 = vsyncadd [#allocation3], 16
          $region86: #{decoder_step.1} parent=55 // pred_fallthru
            _
          %s452 = sld [smem:[#allocation5 + $0x1]]
          %s453 = scalar_lea.vmem %s1, %s452
          %s454 = scalar_lea.vmem [#allocation2], 1
          %s455 = scalar_lea.sflag [#allocation3], 1
          // Predicated region
          $region87: #{decoder_step.1} parent=55 // pred_check
            _
          $region88: #{decoder_step.1} parent=55 // pred_check_branch
            %457 = sbr.rel target = $region90
          $region89: #{decoder_step.1} parent=55 // pred_region
            // Predicated region
            $region102: #{decoder_step.1} parent=89 // pred_check
              _
            $region103: #{decoder_step.1} parent=89 // pred_check_branch
              %473 = sbr.rel (0) target = $region105
            $region104: #{decoder_step.1} parent=89 // pred_region
              %s475 = ssub.s32 2, 1
              loop: start=0, step=1, limit=1
              $region106: #{decoder_step.1} parent=104 // loop_pre_header
                _
              $region107: #{decoder_step.1} parent=104 // loop_header
                %s477 = sphi 0, %s481
                %p478 = scmp.ge.s32.totalorder %s477, 1
                %s482 = sphi %s453, %s453
                %s483 = sphi %s454, %s454
              $region108: #{decoder_step.1} parent=104 // loop_header_branch
                %480 = sbr.rel (%p478) target = $region112
              $region109: #{decoder_step.1} parent=104 // loop_body
                %v484 = vld [vmem:[%s482] sm:%s475]
                %485 = vst [vmem:[%s483] sm:%s475] %v484
              $region110: #{decoder_step.1} parent=104 // loop_footer
                %s481 = sadd.s32 1, %s477
              $region111: #{decoder_step.1} parent=104 // loop_footer_branch
                %476 = sbr.rel target = $region107
              $region112: #{decoder_step.1} parent=104 // loop_exit
                _
            $region105: #{decoder_step.1} parent=89 // pred_fallthru
              _
          $region90: #{decoder_step.1} parent=55 // pred_fallthru
            _
          // Predicated region
          $region91: #{decoder_step.1} parent=55 // pred_check
            _
          $region92: #{decoder_step.1} parent=55 // pred_check_branch
            %459 = sbr.rel (0) target = $region94
          $region93: #{decoder_step.1} parent=55 // pred_region
            %s461 = ssub.s32 2, 1
            loop: start=0, step=1, limit=1
            $region95: #{decoder_step.1} parent=93 // loop_pre_header
              _
            $region96: #{decoder_step.1} parent=93 // loop_header
              %s463 = sphi 0, %s467
              %p464 = scmp.ge.s32.totalorder %s463, 1
              %s468 = sphi %s453, %s453
              %s469 = sphi %s454, %s454
            $region97: #{decoder_step.1} parent=93 // loop_header_branch
              %466 = sbr.rel (%p464) target = $region101
            $region98: #{decoder_step.1} parent=93 // loop_body
              %v470 = vld [vmem:[%s468] sm:%s461]
              %471 = vst [vmem:[%s469] sm:%s461] %v470
            $region99: #{decoder_step.1} parent=93 // loop_footer
              %s467 = sadd.s32 1, %s463
            $region100: #{decoder_step.1} parent=93 // loop_footer_branch
              %462 = sbr.rel target = $region96
            $region101: #{decoder_step.1} parent=93 // loop_exit
              _
          $region94: #{decoder_step.1} parent=55 // pred_fallthru
            _
          // Predicated region
          $region113: #{decoder_step.1} parent=55 // pred_check
            _
          $region114: #{decoder_step.1} parent=55 // pred_check_branch
            %488 = sbr.rel (0) target = $region116
          $region115: #{decoder_step.1} parent=55 // pred_region
            %489 = vsyncadd %s455, 16
          $region116: #{decoder_step.1} parent=55 // pred_fallthru
            _
          %s490 = sld [smem:[#allocation5 + $0x2]]
          %s491 = scalar_lea.vmem %s1, %s490
          %s492 = scalar_lea.vmem [#allocation2], 2
          %s493 = scalar_lea.sflag [#allocation3], 2
          // Predicated region
          $region117: #{decoder_step.1} parent=55 // pred_check
            _
          $region118: #{decoder_step.1} parent=55 // pred_check_branch
            %495 = sbr.rel target = $region120
          $region119: #{decoder_step.1} parent=55 // pred_region
            // Predicated region
            $region132: #{decoder_step.1} parent=119 // pred_check
              _
            $region133: #{decoder_step.1} parent=119 // pred_check_branch
              %511 = sbr.rel (0) target = $region135
            $region134: #{decoder_step.1} parent=119 // pred_region
              %s513 = ssub.s32 2, 1
              loop: start=0, step=1, limit=1
              $region136: #{decoder_step.1} parent=134 // loop_pre_header
                _
              $region137: #{decoder_step.1} parent=134 // loop_header
                %s515 = sphi 0, %s519
                %p516 = scmp.ge.s32.totalorder %s515, 1
                %s520 = sphi %s491, %s491
                %s521 = sphi %s492, %s492
              $region138: #{decoder_step.1} parent=134 // loop_header_branch
                %518 = sbr.rel (%p516) target = $region142
              $region139: #{decoder_step.1} parent=134 // loop_body
                %v522 = vld [vmem:[%s520] sm:%s513]
                %523 = vst [vmem:[%s521] sm:%s513] %v522
              $region140: #{decoder_step.1} parent=134 // loop_footer
                %s519 = sadd.s32 1, %s515
              $region141: #{decoder_step.1} parent=134 // loop_footer_branch
                %514 = sbr.rel target = $region137
              $region142: #{decoder_step.1} parent=134 // loop_exit
                _
            $region135: #{decoder_step.1} parent=119 // pred_fallthru
              _
          $region120: #{decoder_step.1} parent=55 // pred_fallthru
            _
          // Predicated region
          $region121: #{decoder_step.1} parent=55 // pred_check
            _
          $region122: #{decoder_step.1} parent=55 // pred_check_branch
            %497 = sbr.rel (0) target = $region124
          $region123: #{decoder_step.1} parent=55 // pred_region
            %s499 = ssub.s32 2, 1
            loop: start=0, step=1, limit=1
            $region125: #{decoder_step.1} parent=123 // loop_pre_header
              _
            $region126: #{decoder_step.1} parent=123 // loop_header
              %s501 = sphi 0, %s505
              %p502 = scmp.ge.s32.totalorder %s501, 1
              %s506 = sphi %s491, %s491
              %s507 = sphi %s492, %s492
            $region127: #{decoder_step.1} parent=123 // loop_header_branch
              %504 = sbr.rel (%p502) target = $region131
            $region128: #{decoder_step.1} parent=123 // loop_body
              %v508 = vld [vmem:[%s506] sm:%s499]
              %509 = vst [vmem:[%s507] sm:%s499] %v508
            $region129: #{decoder_step.1} parent=123 // loop_footer
              %s505 = sadd.s32 1, %s501
            $region130: #{decoder_step.1} parent=123 // loop_footer_branch
              %500 = sbr.rel target = $region126
            $region131: #{decoder_step.1} parent=123 // loop_exit
              _
          $region124: #{decoder_step.1} parent=55 // pred_fallthru
            _
          // Predicated region
          $region143: #{decoder_step.1} parent=55 // pred_check
            _
          $region144: #{decoder_step.1} parent=55 // pred_check_branch
            %526 = sbr.rel (0) target = $region146
          $region145: #{decoder_step.1} parent=55 // pred_region
            %527 = vsyncadd %s493, 16
          $region146: #{decoder_step.1} parent=55 // pred_fallthru
            _
          %s528 = sld [smem:[#allocation5 + $0x3]]
          %s529 = scalar_lea.vmem %s1, %s528
          %s530 = scalar_lea.vmem [#allocation2], 3
          %s531 = scalar_lea.sflag [#allocation3], 3
          // Predicated region
          $region147: #{decoder_step.1} parent=55 // pred_check
            _
          $region148: #{decoder_step.1} parent=55 // pred_check_branch
            %533 = sbr.rel target = $region150
          $region149: #{decoder_step.1} parent=55 // pred_region
            // Predicated region
            $region162: #{decoder_step.1} parent=149 // pred_check
              _
            $region163: #{decoder_step.1} parent=149 // pred_check_branch
              %549 = sbr.rel (0) target = $region165
            $region164: #{decoder_step.1} parent=149 // pred_region
              %s551 = ssub.s32 2, 1
              loop: start=0, step=1, limit=1
              $region166: #{decoder_step.1} parent=164 // loop_pre_header
                _
              $region167: #{decoder_step.1} parent=164 // loop_header
                %s553 = sphi 0, %s557
                %p554 = scmp.ge.s32.totalorder %s553, 1
                %s558 = sphi %s529, %s529
                %s559 = sphi %s530, %s530
              $region168: #{decoder_step.1} parent=164 // loop_header_branch
                %556 = sbr.rel (%p554) target = $region172
              $region169: #{decoder_step.1} parent=164 // loop_body
                %v560 = vld [vmem:[%s558] sm:%s551]
                %561 = vst [vmem:[%s559] sm:%s551] %v560
              $region170: #{decoder_step.1} parent=164 // loop_footer
                %s557 = sadd.s32 1, %s553
              $region171: #{decoder_step.1} parent=164 // loop_footer_branch
                %552 = sbr.rel target = $region167
              $region172: #{decoder_step.1} parent=164 // loop_exit
                _
            $region165: #{decoder_step.1} parent=149 // pred_fallthru
              _
          $region150: #{decoder_step.1} parent=55 // pred_fallthru
            _
          // Predicated region
          $region151: #{decoder_step.1} parent=55 // pred_check
            _
          $region152: #{decoder_step.1} parent=55 // pred_check_branch
            %535 = sbr.rel (0) target = $region154
          $region153: #{decoder_step.1} parent=55 // pred_region
            %s537 = ssub.s32 2, 1
            loop: start=0, step=1, limit=1
            $region155: #{decoder_step.1} parent=153 // loop_pre_header
              _
            $region156: #{decoder_step.1} parent=153 // loop_header
              %s539 = sphi 0, %s543
              %p540 = scmp.ge.s32.totalorder %s539, 1
              %s544 = sphi %s529, %s529
              %s545 = sphi %s530, %s530
            $region157: #{decoder_step.1} parent=153 // loop_header_branch
              %542 = sbr.rel (%p540) target = $region161
            $region158: #{decoder_step.1} parent=153 // loop_body
              %v546 = vld [vmem:[%s544] sm:%s537]
              %547 = vst [vmem:[%s545] sm:%s537] %v546
            $region159: #{decoder_step.1} parent=153 // loop_footer
              %s543 = sadd.s32 1, %s539
            $region160: #{decoder_step.1} parent=153 // loop_footer_branch
              %538 = sbr.rel target = $region156
            $region161: #{decoder_step.1} parent=153 // loop_exit
              _
          $region154: #{decoder_step.1} parent=55 // pred_fallthru
            _
          // Predicated region
          $region173: #{decoder_step.1} parent=55 // pred_check
            _
          $region174: #{decoder_step.1} parent=55 // pred_check_branch
            %564 = sbr.rel (0) target = $region176
          $region175: #{decoder_step.1} parent=55 // pred_region
            %565 = vsyncadd %s531, 16
          $region176: #{decoder_step.1} parent=55 // pred_fallthru
            _
          %s566 = sld [smem:[#allocation5 + $0x4]]
          %s567 = scalar_lea.vmem %s1, %s566
          %s568 = scalar_lea.vmem [#allocation2], 4
          %s569 = scalar_lea.sflag [#allocation3], 4
          // Predicated region
          $region177: #{decoder_step.1} parent=55 // pred_check
            _
          $region178: #{decoder_step.1} parent=55 // pred_check_branch
            %571 = sbr.rel target = $region180
          $region179: #{decoder_step.1} parent=55 // pred_region
            // Predicated region
            $region192: #{decoder_step.1} parent=179 // pred_check
              _
            $region193: #{decoder_step.1} parent=179 // pred_check_branch
              %587 = sbr.rel (0) target = $region195
            $region194: #{decoder_step.1} parent=179 // pred_region
              %s589 = ssub.s32 2, 1
              loop: start=0, step=1, limit=1
              $region196: #{decoder_step.1} parent=194 // loop_pre_header
                _
              $region197: #{decoder_step.1} parent=194 // loop_header
                %s591 = sphi 0, %s595
                %p592 = scmp.ge.s32.totalorder %s591, 1
                %s596 = sphi %s567, %s567
                %s597 = sphi %s568, %s568
              $region198: #{decoder_step.1} parent=194 // loop_header_branch
                %594 = sbr.rel (%p592) target = $region202
              $region199: #{decoder_step.1} parent=194 // loop_body
                %v598 = vld [vmem:[%s596] sm:%s589]
                %599 = vst [vmem:[%s597] sm:%s589] %v598
              $region200: #{decoder_step.1} parent=194 // loop_footer
                %s595 = sadd.s32 1, %s591
              $region201: #{decoder_step.1} parent=194 // loop_footer_branch
                %590 = sbr.rel target = $region197
              $region202: #{decoder_step.1} parent=194 // loop_exit
                _
            $region195: #{decoder_step.1} parent=179 // pred_fallthru
              _
          $region180: #{decoder_step.1} parent=55 // pred_fallthru
            _
          // Predicated region
          $region181: #{decoder_step.1} parent=55 // pred_check
            _
          $region182: #{decoder_step.1} parent=55 // pred_check_branch
            %573 = sbr.rel (0) target = $region184
          $region183: #{decoder_step.1} parent=55 // pred_region
            %s575 = ssub.s32 2, 1
            loop: start=0, step=1, limit=1
            $region185: #{decoder_step.1} parent=183 // loop_pre_header
              _
            $region186: #{decoder_step.1} parent=183 // loop_header
              %s577 = sphi 0, %s581
              %p578 = scmp.ge.s32.totalorder %s577, 1
              %s582 = sphi %s567, %s567
              %s583 = sphi %s568, %s568
            $region187: #{decoder_step.1} parent=183 // loop_header_branch
              %580 = sbr.rel (%p578) target = $region191
            $region188: #{decoder_step.1} parent=183 // loop_body
              %v584 = vld [vmem:[%s582] sm:%s575]
              %585 = vst [vmem:[%s583] sm:%s575] %v584
            $region189: #{decoder_step.1} parent=183 // loop_footer
              %s581 = sadd.s32 1, %s577
            $region190: #{decoder_step.1} parent=183 // loop_footer_branch
              %576 = sbr.rel target = $region186
            $region191: #{decoder_step.1} parent=183 // loop_exit
              _
          $region184: #{decoder_step.1} parent=55 // pred_fallthru
            _
          // Predicated region
          $region203: #{decoder_step.1} parent=55 // pred_check
            _
          $region204: #{decoder_step.1} parent=55 // pred_check_branch
            %602 = sbr.rel (0) target = $region206
          $region205: #{decoder_step.1} parent=55 // pred_region
            %603 = vsyncadd %s569, 16
          $region206: #{decoder_step.1} parent=55 // pred_fallthru
            _
          %s604 = sld [smem:[#allocation5 + $0x5]]
          %s605 = scalar_lea.vmem %s1, %s604
          %s606 = scalar_lea.vmem [#allocation2], 5
          %s607 = scalar_lea.sflag [#allocation3], 5
          // Predicated region
          $region207: #{decoder_step.1} parent=55 // pred_check
            _
          $region208: #{decoder_step.1} parent=55 // pred_check_branch
            %609 = sbr.rel target = $region210
          $region209: #{decoder_step.1} parent=55 // pred_region
            // Predicated region
            $region222: #{decoder_step.1} parent=209 // pred_check
              _
            $region223: #{decoder_step.1} parent=209 // pred_check_branch
              %625 = sbr.rel (0) target = $region225
            $region224: #{decoder_step.1} parent=209 // pred_region
              %s627 = ssub.s32 2, 1
              loop: start=0, step=1, limit=1
              $region226: #{decoder_step.1} parent=224 // loop_pre_header
                _
              $region227: #{decoder_step.1} parent=224 // loop_header
                %s629 = sphi 0, %s633
                %p630 = scmp.ge.s32.totalorder %s629, 1
                %s634 = sphi %s605, %s605
                %s635 = sphi %s606, %s606
              $region228: #{decoder_step.1} parent=224 // loop_header_branch
                %632 = sbr.rel (%p630) target = $region232
              $region229: #{decoder_step.1} parent=224 // loop_body
                %v636 = vld [vmem:[%s634] sm:%s627]
                %637 = vst [vmem:[%s635] sm:%s627] %v636
              $region230: #{decoder_step.1} parent=224 // loop_footer
                %s633 = sadd.s32 1, %s629
              $region231: #{decoder_step.1} parent=224 // loop_footer_branch
                %628 = sbr.rel target = $region227
              $region232: #{decoder_step.1} parent=224 // loop_exit
                _
            $region225: #{decoder_step.1} parent=209 // pred_fallthru
              _
          $region210: #{decoder_step.1} parent=55 // pred_fallthru
            _
          // Predicated region
          $region211: #{decoder_step.1} parent=55 // pred_check
            _
          $region212: #{decoder_step.1} parent=55 // pred_check_branch
            %611 = sbr.rel (0) target = $region214
          $region213: #{decoder_step.1} parent=55 // pred_region
            %s613 = ssub.s32 2, 1
            loop: start=0, step=1, limit=1
            $region215: #{decoder_step.1} parent=213 // loop_pre_header
              _
            $region216: #{decoder_step.1} parent=213 // loop_header
              %s615 = sphi 0, %s619
              %p616 = scmp.ge.s32.totalorder %s615, 1
              %s620 = sphi %s605, %s605
              %s621 = sphi %s606, %s606
            $region217: #{decoder_step.1} parent=213 // loop_header_branch
              %618 = sbr.rel (%p616) target = $region221
            $region218: #{decoder_step.1} parent=213 // loop_body
              %v622 = vld [vmem:[%s620] sm:%s613]
              %623 = vst [vmem:[%s621] sm:%s613] %v622
            $region219: #{decoder_step.1} parent=213 // loop_footer
              %s619 = sadd.s32 1, %s615
            $region220: #{decoder_step.1} parent=213 // loop_footer_branch
              %614 = sbr.rel target = $region216
            $region221: #{decoder_step.1} parent=213 // loop_exit
              _
          $region214: #{decoder_step.1} parent=55 // pred_fallthru
            _
          // Predicated region
          $region233: #{decoder_step.1} parent=55 // pred_check
            _
          $region234: #{decoder_step.1} parent=55 // pred_check_branch
            %640 = sbr.rel (0) target = $region236
          $region235: #{decoder_step.1} parent=55 // pred_region
            %641 = vsyncadd %s607, 16
          $region236: #{decoder_step.1} parent=55 // pred_fallthru
            _
          %s642 = sld [smem:[#allocation5 + $0x6]]
          %s643 = scalar_lea.vmem %s1, %s642
          %s644 = scalar_lea.vmem [#allocation2], 6
          %s645 = scalar_lea.sflag [#allocation3], 6
          // Predicated region
          $region237: #{decoder_step.1} parent=55 // pred_check
            _
          $region238: #{decoder_step.1} parent=55 // pred_check_branch
            %647 = sbr.rel target = $region240
          $region239: #{decoder_step.1} parent=55 // pred_region
            // Predicated region
            $region252: #{decoder_step.1} parent=239 // pred_check
              _
            $region253: #{decoder_step.1} parent=239 // pred_check_branch
              %663 = sbr.rel (0) target = $region255
            $region254: #{decoder_step.1} parent=239 // pred_region
              %s665 = ssub.s32 2, 1
              loop: start=0, step=1, limit=1
              $region256: #{decoder_step.1} parent=254 // loop_pre_header
                _
              $region257: #{decoder_step.1} parent=254 // loop_header
                %s667 = sphi 0, %s671
                %p668 = scmp.ge.s32.totalorder %s667, 1
                %s672 = sphi %s643, %s643
                %s673 = sphi %s644, %s644
              $region258: #{decoder_step.1} parent=254 // loop_header_branch
                %670 = sbr.rel (%p668) target = $region262
              $region259: #{decoder_step.1} parent=254 // loop_body
                %v674 = vld [vmem:[%s672] sm:%s665]
                %675 = vst [vmem:[%s673] sm:%s665] %v674
              $region260: #{decoder_step.1} parent=254 // loop_footer
                %s671 = sadd.s32 1, %s667
              $region261: #{decoder_step.1} parent=254 // loop_footer_branch
                %666 = sbr.rel target = $region257
              $region262: #{decoder_step.1} parent=254 // loop_exit
                _
            $region255: #{decoder_step.1} parent=239 // pred_fallthru
              _
          $region240: #{decoder_step.1} parent=55 // pred_fallthru
            _
          // Predicated region
          $region241: #{decoder_step.1} parent=55 // pred_check
            _
          $region242: #{decoder_step.1} parent=55 // pred_check_branch
            %649 = sbr.rel (0) target = $region244
          $region243: #{decoder_step.1} parent=55 // pred_region
            %s651 = ssub.s32 2, 1
            loop: start=0, step=1, limit=1
            $region245: #{decoder_step.1} parent=243 // loop_pre_header
              _
            $region246: #{decoder_step.1} parent=243 // loop_header
              %s653 = sphi 0, %s657
              %p654 = scmp.ge.s32.totalorder %s653, 1
              %s658 = sphi %s643, %s643
              %s659 = sphi %s644, %s644
            $region247: #{decoder_step.1} parent=243 // loop_header_branch
              %656 = sbr.rel (%p654) target = $region251
            $region248: #{decoder_step.1} parent=243 // loop_body
              %v660 = vld [vmem:[%s658] sm:%s651]
              %661 = vst [vmem:[%s659] sm:%s651] %v660
            $region249: #{decoder_step.1} parent=243 // loop_footer
              %s657 = sadd.s32 1, %s653
            $region250: #{decoder_step.1} parent=243 // loop_footer_branch
              %652 = sbr.rel target = $region246
            $region251: #{decoder_step.1} parent=243 // loop_exit
              _
          $region244: #{decoder_step.1} parent=55 // pred_fallthru
            _
          // Predicated region
          $region263: #{decoder_step.1} parent=55 // pred_check
            _
          $region264: #{decoder_step.1} parent=55 // pred_check_branch
            %678 = sbr.rel (0) target = $region266
          $region265: #{decoder_step.1} parent=55 // pred_region
            %679 = vsyncadd %s645, 16
          $region266: #{decoder_step.1} parent=55 // pred_fallthru
            _
          %s680 = sld [smem:[#allocation5 + $0x7]]
          %s681 = scalar_lea.vmem %s1, %s680
          %s682 = scalar_lea.vmem [#allocation2], 7
          %s683 = scalar_lea.sflag [#allocation3], 7
          // Predicated region
          $region267: #{decoder_step.1} parent=55 // pred_check
            _
          $region268: #{decoder_step.1} parent=55 // pred_check_branch
            %685 = sbr.rel target = $region270
          $region269: #{decoder_step.1} parent=55 // pred_region
            // Predicated region
            $region282: #{decoder_step.1} parent=269 // pred_check
              _
            $region283: #{decoder_step.1} parent=269 // pred_check_branch
              %701 = sbr.rel (0) target = $region285
            $region284: #{decoder_step.1} parent=269 // pred_region
              %s703 = ssub.s32 2, 1
              loop: start=0, step=1, limit=1
              $region286: #{decoder_step.1} parent=284 // loop_pre_header
                _
              $region287: #{decoder_step.1} parent=284 // loop_header
                %s705 = sphi 0, %s709
                %p706 = scmp.ge.s32.totalorder %s705, 1
                %s710 = sphi %s681, %s681
                %s711 = sphi %s682, %s682
              $region288: #{decoder_step.1} parent=284 // loop_header_branch
                %708 = sbr.rel (%p706) target = $region292
              $region289: #{decoder_step.1} parent=284 // loop_body
                %v712 = vld [vmem:[%s710] sm:%s703]
                %713 = vst [vmem:[%s711] sm:%s703] %v712
              $region290: #{decoder_step.1} parent=284 // loop_footer
                %s709 = sadd.s32 1, %s705
              $region291: #{decoder_step.1} parent=284 // loop_footer_branch
                %704 = sbr.rel target = $region287
              $region292: #{decoder_step.1} parent=284 // loop_exit
                _
            $region285: #{decoder_step.1} parent=269 // pred_fallthru
              _
          $region270: #{decoder_step.1} parent=55 // pred_fallthru
            _
          // Predicated region
          $region271: #{decoder_step.1} parent=55 // pred_check
            _
          $region272: #{decoder_step.1} parent=55 // pred_check_branch
            %687 = sbr.rel (0) target = $region274
          $region273: #{decoder_step.1} parent=55 // pred_region
            %s689 = ssub.s32 2, 1
            loop: start=0, step=1, limit=1
            $region275: #{decoder_step.1} parent=273 // loop_pre_header
              _
            $region276: #{decoder_step.1} parent=273 // loop_header
              %s691 = sphi 0, %s695
              %p692 = scmp.ge.s32.totalorder %s691, 1
              %s696 = sphi %s681, %s681
              %s697 = sphi %s682, %s682
            $region277: #{decoder_step.1} parent=273 // loop_header_branch
              %694 = sbr.rel (%p692) target = $region281
            $region278: #{decoder_step.1} parent=273 // loop_body
              %v698 = vld [vmem:[%s696] sm:%s689]
              %699 = vst [vmem:[%s697] sm:%s689] %v698
            $region279: #{decoder_step.1} parent=273 // loop_footer
              %s695 = sadd.s32 1, %s691
            $region280: #{decoder_step.1} parent=273 // loop_footer_branch
              %690 = sbr.rel target = $region276
            $region281: #{decoder_step.1} parent=273 // loop_exit
              _
          $region274: #{decoder_step.1} parent=55 // pred_fallthru
            _
          // Predicated region
          $region293: #{decoder_step.1} parent=55 // pred_check
            _
          $region294: #{decoder_step.1} parent=55 // pred_check_branch
            %716 = sbr.rel (0) target = $region296
          $region295: #{decoder_step.1} parent=55 // pred_region
            %717 = vsyncadd %s683, 16
          $region296: #{decoder_step.1} parent=55 // pred_fallthru
            _
          %s718 = sld [smem:[#allocation5]]
          %s719 = smul.u32 1, 1
          %s720 = sshll.u32 %s719, 4
          %721 = dma.done [#allocation3], %s720
          %s722 = sld [smem:[#allocation5 + $0x1]]
          %s723 = sshll.u32 %s719, 4
          %724 = dma.done %s455, %s723
          %s725 = sld [smem:[#allocation5 + $0x2]]
          %s726 = sshll.u32 %s719, 4
          %727 = dma.done %s493, %s726
          %s728 = sld [smem:[#allocation5 + $0x3]]
          %s729 = sshll.u32 %s719, 4
          %730 = dma.done %s531, %s729
          %s731 = sld [smem:[#allocation5 + $0x4]]
          %s732 = sshll.u32 %s719, 4
          %733 = dma.done %s569, %s732
          %s734 = sld [smem:[#allocation5 + $0x5]]
          %s735 = sshll.u32 %s719, 4
          %736 = dma.done %s607, %s735
          %s737 = sld [smem:[#allocation5 + $0x6]]
          %s738 = sshll.u32 %s719, 4
          %739 = dma.done %s645, %s738
          %s740 = sld [smem:[#allocation5 + $0x7]]
          %s741 = sshll.u32 %s719, 4
          %742 = dma.done %s683, %s741
        $region56: #{decoder_step.1} parent=43 // pred_fallthru
          _
        %v743 = vld [vmem:[%s395] sm:$0xff]
        %v744 = vld [vmem:[%s399] sm:$0xff]
        %v745 = vld [vmem:[%s338] sm:$0xff]
        %v746 = vld [vmem:[%s338 + $0x8] sm:$0xff]
        %v747 = vld [vmem:[%s338 + $0x10] sm:$0xff]
        %v748 = vld [vmem:[%s338 + $0x18] sm:$0xff]
        %v749 = vld [vmem:[%s338 + $0x20] sm:$0xff]
        %v750 = vld [vmem:[%s338 + $0x28] sm:$0xff]
        %v751 = vld [vmem:[%s338 + $0x30] sm:$0xff]
        %v752 = vld [vmem:[%s338 + $0x38] sm:$0xff]
        %v753 = vld [vmem:[%s338 + $0x40] sm:$0xff]
        %v754 = vld [vmem:[%s338 + $0x48] sm:$0xff]
        %v755 = vld [vmem:[%s338 + $0x50] sm:$0xff]
        %v756 = vld [vmem:[%s338 + $0x58] sm:$0xff]
        %v757 = vld [vmem:[%s338 + $0x60] sm:$0xff]
        %v758 = vld [vmem:[%s338 + $0x68] sm:$0xff]
        %v759 = vld [vmem:[%s338 + $0x70] sm:$0xff]
        %v760 = vld [vmem:[%s338 + $0x78] sm:$0xff]
        %v761 = vld [vmem:[%s338 + $0x80] sm:$0xff]
        %v762 = vld [vmem:[%s338 + $0x88] sm:$0xff]
        %v763 = vld [vmem:[%s338 + $0x90] sm:$0xff]
        %v764 = vld [vmem:[%s338 + $0x98] sm:$0xff]
        %v765 = vld [vmem:[%s338 + $0xa0] sm:$0xff]
        %v766 = vld [vmem:[%s338 + $0xa8] sm:$0xff]
        %v767 = vld [vmem:[%s338 + $0xb0] sm:$0xff]
        %v768 = vld [vmem:[%s338 + $0xb8] sm:$0xff]
        %v769 = vld [vmem:[%s338 + $0xc0] sm:$0xff]
        %v770 = vld [vmem:[%s338 + $0xc8] sm:$0xff]
        %v771 = vld [vmem:[%s338 + $0xd0] sm:$0xff]
        %v772 = vld [vmem:[%s338 + $0xd8] sm:$0xff]
        %v773 = vld [vmem:[%s338 + $0xe0] sm:$0xff]
        %v774 = vld [vmem:[%s338 + $0xe8] sm:$0xff]
        %v775 = vld [vmem:[%s338 + $0xf0] sm:$0xff]
        %v776 = vld [vmem:[%s338 + $0xf8] sm:$0xff]
        %v777 = vld [vmem:[%s338 + $0x100] sm:$0xff]
        %v778 = vld [vmem:[%s338 + $0x108] sm:$0xff]
        %v779 = vld [vmem:[%s338 + $0x110] sm:$0xff]
        %v780 = vld [vmem:[%s338 + $0x118] sm:$0xff]
        %v781 = vld [vmem:[%s338 + $0x120] sm:$0xff]
        %v782 = vld [vmem:[%s338 + $0x128] sm:$0xff]
        %v783 = vld [vmem:[%s338 + $0x130] sm:$0xff]
        %v784 = vld [vmem:[%s338 + $0x138] sm:$0xff]
        %v785 = vld [vmem:[%s338 + $0x140] sm:$0xff]
        %v786 = vld [vmem:[%s338 + $0x148] sm:$0xff]
        %v787 = vld [vmem:[%s338 + $0x150] sm:$0xff]
        %v788 = vld [vmem:[%s338 + $0x158] sm:$0xff]
        %v789 = vld [vmem:[%s338 + $0x160] sm:$0xff]
        %v790 = vld [vmem:[%s338 + $0x168] sm:$0xff]
        %v791 = vld [vmem:[%s338 + $0x170] sm:$0xff]
        %v792 = vld [vmem:[%s338 + $0x178] sm:$0xff]
        %v793 = vld [vmem:[%s338 + $0x180] sm:$0xff]
        %v794 = vld [vmem:[%s338 + $0x188] sm:$0xff]
        %v795 = vld [vmem:[%s338 + $0x190] sm:$0xff]
        %v796 = vld [vmem:[%s338 + $0x198] sm:$0xff]
        %v797 = vld [vmem:[%s338 + $0x1a0] sm:$0xff]
        %v798 = vld [vmem:[%s338 + $0x1a8] sm:$0xff]
        %v799 = vld [vmem:[%s338 + $0x1b0] sm:$0xff]
        %v800 = vld [vmem:[%s338 + $0x1b8] sm:$0xff]
        %v801 = vld [vmem:[%s338 + $0x1c0] sm:$0xff]
        %v802 = vld [vmem:[%s338 + $0x1c8] sm:$0xff]
        %v803 = vld [vmem:[%s338 + $0x1d0] sm:$0xff]
        %v804 = vld [vmem:[%s338 + $0x1d8] sm:$0xff]
        %v805 = vld [vmem:[%s338 + $0x1e0] sm:$0xff]
        %v806 = vld [vmem:[%s338 + $0x1e8] sm:$0xff]
        %v807 = vld [vmem:[%s338 + $0x1f0] sm:$0xff]
        %v808 = vld [vmem:[%s338 + $0x1f8] sm:$0xff]
        %v809 = vld [vmem:[%s338 + $0x200] sm:$0xff]
        %v810 = vld [vmem:[%s338 + $0x208] sm:$0xff]
        %v811 = vld [vmem:[%s338 + $0x210] sm:$0xff]
        %v812 = vld [vmem:[%s338 + $0x218] sm:$0xff]
        %v813 = vld [vmem:[%s338 + $0x220] sm:$0xff]
        %v814 = vld [vmem:[%s338 + $0x228] sm:$0xff]
        %v815 = vld [vmem:[%s338 + $0x230] sm:$0xff]
        %v816 = vld [vmem:[%s338 + $0x238] sm:$0xff]
        %v817 = vld [vmem:[%s338 + $0x240] sm:$0xff]
        %v818 = vld [vmem:[%s338 + $0x248] sm:$0xff]
        %v819 = vld [vmem:[%s338 + $0x250] sm:$0xff]
        %v820 = vld [vmem:[%s338 + $0x258] sm:$0xff]
        %v821 = vld [vmem:[%s338 + $0x260] sm:$0xff]
        %v822 = vld [vmem:[%s338 + $0x268] sm:$0xff]
        %v823 = vld [vmem:[%s338 + $0x270] sm:$0xff]
        %v824 = vld [vmem:[%s338 + $0x278] sm:$0xff]
        %v825 = vld [vmem:[%s338 + $0x280] sm:$0xff]
        %v826 = vld [vmem:[%s338 + $0x288] sm:$0xff]
        %v827 = vld [vmem:[%s338 + $0x290] sm:$0xff]
        %v828 = vld [vmem:[%s338 + $0x298] sm:$0xff]
        %v829 = vld [vmem:[%s338 + $0x2a0] sm:$0xff]
        %v830 = vld [vmem:[%s338 + $0x2a8] sm:$0xff]
        %v831 = vld [vmem:[%s338 + $0x2b0] sm:$0xff]
        %v832 = vld [vmem:[%s338 + $0x2b8] sm:$0xff]
        %v833 = vld [vmem:[%s338 + $0x2c0] sm:$0xff]
        %v834 = vld [vmem:[%s338 + $0x2c8] sm:$0xff]
        %v835 = vld [vmem:[%s338 + $0x2d0] sm:$0xff]
        %v836 = vld [vmem:[%s338 + $0x2d8] sm:$0xff]
        %v837 = vld [vmem:[%s338 + $0x2e0] sm:$0xff]
        %v838 = vld [vmem:[%s338 + $0x2e8] sm:$0xff]
        %v839 = vld [vmem:[%s338 + $0x2f0] sm:$0xff]
        %v840 = vld [vmem:[%s338 + $0x2f8] sm:$0xff]
        %v841 = vld [vmem:[%s338 + $0x300] sm:$0xff]
        %v842 = vld [vmem:[%s338 + $0x308] sm:$0xff]
        %v843 = vld [vmem:[%s338 + $0x310] sm:$0xff]
        %v844 = vld [vmem:[%s338 + $0x318] sm:$0xff]
        %v845 = vld [vmem:[%s338 + $0x320] sm:$0xff]
        %v846 = vld [vmem:[%s338 + $0x328] sm:$0xff]
        %v847 = vld [vmem:[%s338 + $0x330] sm:$0xff]
        %v848 = vld [vmem:[%s338 + $0x338] sm:$0xff]
        %v849 = vld [vmem:[%s338 + $0x340] sm:$0xff]
        %v850 = vld [vmem:[%s338 + $0x348] sm:$0xff]
        %v851 = vld [vmem:[%s338 + $0x350] sm:$0xff]
        %v852 = vld [vmem:[%s338 + $0x358] sm:$0xff]
        %v853 = vld [vmem:[%s338 + $0x360] sm:$0xff]
        %v854 = vld [vmem:[%s338 + $0x368] sm:$0xff]
        %v855 = vld [vmem:[%s338 + $0x370] sm:$0xff]
        %v856 = vld [vmem:[%s338 + $0x378] sm:$0xff]
        %v857 = vld [vmem:[%s338 + $0x380] sm:$0xff]
        %v858 = vld [vmem:[%s338 + $0x388] sm:$0xff]
        %v859 = vld [vmem:[%s338 + $0x390] sm:$0xff]
        %v860 = vld [vmem:[%s338 + $0x398] sm:$0xff]
        %v861 = vld [vmem:[%s338 + $0x3a0] sm:$0xff]
        %v862 = vld [vmem:[%s338 + $0x3a8] sm:$0xff]
        %v863 = vld [vmem:[%s338 + $0x3b0] sm:$0xff]
        %v864 = vld [vmem:[%s338 + $0x3b8] sm:$0xff]
        %v865 = vld [vmem:[%s338 + $0x3c0] sm:$0xff]
        %v866 = vld [vmem:[%s338 + $0x3c8] sm:$0xff]
        %v867 = vld [vmem:[%s338 + $0x3d0] sm:$0xff]
        %v868 = vld [vmem:[%s338 + $0x3d8] sm:$0xff]
        %v869 = vld [vmem:[%s338 + $0x3e0] sm:$0xff]
        %v870 = vld [vmem:[%s338 + $0x3e8] sm:$0xff]
        %v871 = vld [vmem:[%s338 + $0x3f0] sm:$0xff]
        %v872 = vld [vmem:[%s338 + $0x3f8] sm:$0xff]
        %v873 = vld [vmem:[#allocation2] sm:$0xff]
        %v874 = vld [vmem:[%s403] sm:$0xf]
        %v876 = vperm.slane %v874, 0
        %v877 = vperm.slane %v874, 1
        %v878 = vperm.slane %v874, 2
        %v879 = vperm.slane %v874, 3
        %884 = vmatpush.msra.mxu0 %v805
        %885 = vmatpush.msra.mxu0 %v801
        %886 = vmatpush.msra.mxu0 %v797
        %887 = vmatpush.msra.mxu0 %v793
        %888 = vmatpush.msra.mxu0 %v789
        %889 = vmatpush.msra.mxu0 %v785
        %890 = vmatpush.msra.mxu0 %v781
        %891 = vmatpush.msra.mxu0 %v777
        %892 = vmatpush.msra.mxu0 %v773
        %893 = vmatpush.msra.mxu0 %v769
        %894 = vmatpush.msra.mxu0 %v765
        %895 = vmatpush.msra.mxu0 %v761
        %896 = vmatpush.msra.mxu0 %v757
        %897 = vmatpush.msra.mxu0 %v753
        %898 = vmatpush.msra.mxu0 %v749
        %899 = vmatpush.msra.mxu0 %v745
        %900 = vmatmul.f32.gmra.mxu0 %v873
        %v901 = vpop.f32.mrf.mxu0
        %v902 = vadd.f32 %v876, %v901
        %903 = vdwg.mxu0
        %904 = vmatpush.msra.mxu0 %v869
        %905 = vmatpush.msra.mxu0 %v865
        %906 = vmatpush.msra.mxu0 %v861
        %907 = vmatpush.msra.mxu0 %v857
        %908 = vmatpush.msra.mxu0 %v853
        %909 = vmatpush.msra.mxu0 %v849
        %910 = vmatpush.msra.mxu0 %v845
        %911 = vmatpush.msra.mxu0 %v841
        %912 = vmatpush.msra.mxu0 %v837
        %913 = vmatpush.msra.mxu0 %v833
        %914 = vmatpush.msra.mxu0 %v829
        %915 = vmatpush.msra.mxu0 %v825
        %916 = vmatpush.msra.mxu0 %v821
        %917 = vmatpush.msra.mxu0 %v817
        %918 = vmatpush.msra.mxu0 %v813
        %919 = vmatpush.msra.mxu0 %v809
        %920 = vmatmul.f32.gmra.mxu0 %v743
        %v921 = vpop.f32.mrf.mxu0
        %v922 = vadd.f32 %v902, %v921
        %923 = vdwg.mxu0
        %924 = vmatpush.msra.mxu0 %v806
        %925 = vmatpush.msra.mxu0 %v802
        %926 = vmatpush.msra.mxu0 %v798
        %927 = vmatpush.msra.mxu0 %v794
        %928 = vmatpush.msra.mxu0 %v790
        %929 = vmatpush.msra.mxu0 %v786
        %930 = vmatpush.msra.mxu0 %v782
        %931 = vmatpush.msra.mxu0 %v778
        %932 = vmatpush.msra.mxu0 %v774
        %933 = vmatpush.msra.mxu0 %v770
        %934 = vmatpush.msra.mxu0 %v766
        %935 = vmatpush.msra.mxu0 %v762
        %936 = vmatpush.msra.mxu0 %v758
        %937 = vmatpush.msra.mxu0 %v754
        %938 = vmatpush.msra.mxu0 %v750
        %939 = vmatpush.msra.mxu0 %v746
        %940 = vmatmul.f32.gmra.mxu0 %v873
        %v941 = vpop.f32.mrf.mxu0
        %v942 = vadd.f32 %v877, %v941
        %943 = vdwg.mxu0
        %944 = vmatpush.msra.mxu0 %v870
        %945 = vmatpush.msra.mxu0 %v866
        %946 = vmatpush.msra.mxu0 %v862
        %947 = vmatpush.msra.mxu0 %v858
        %948 = vmatpush.msra.mxu0 %v854
        %949 = vmatpush.msra.mxu0 %v850
        %950 = vmatpush.msra.mxu0 %v846
        %951 = vmatpush.msra.mxu0 %v842
        %952 = vmatpush.msra.mxu0 %v838
        %953 = vmatpush.msra.mxu0 %v834
        %954 = vmatpush.msra.mxu0 %v830
        %955 = vmatpush.msra.mxu0 %v826
        %956 = vmatpush.msra.mxu0 %v822
        %957 = vmatpush.msra.mxu0 %v818
        %958 = vmatpush.msra.mxu0 %v814
        %959 = vmatpush.msra.mxu0 %v810
        %960 = vmatmul.f32.gmra.mxu0 %v743
        %v961 = vpop.f32.mrf.mxu0
        %v962 = vadd.f32 %v942, %v961
        %963 = vdwg.mxu0
        %964 = vmatpush.msra.mxu0 %v807
        %965 = vmatpush.msra.mxu0 %v803
        %966 = vmatpush.msra.mxu0 %v799
        %967 = vmatpush.msra.mxu0 %v795
        %968 = vmatpush.msra.mxu0 %v791
        %969 = vmatpush.msra.mxu0 %v787
        %970 = vmatpush.msra.mxu0 %v783
        %971 = vmatpush.msra.mxu0 %v779
        %972 = vmatpush.msra.mxu0 %v775
        %973 = vmatpush.msra.mxu0 %v771
        %974 = vmatpush.msra.mxu0 %v767
        %975 = vmatpush.msra.mxu0 %v763
        %976 = vmatpush.msra.mxu0 %v759
        %977 = vmatpush.msra.mxu0 %v755
        %978 = vmatpush.msra.mxu0 %v751
        %979 = vmatpush.msra.mxu0 %v747
        %980 = vmatmul.f32.gmra.mxu0 %v873
        %v981 = vpop.f32.mrf.mxu0
        %v982 = vadd.f32 %v878, %v981
        %983 = vdwg.mxu0
        %984 = vmatpush.msra.mxu0 %v871
        %985 = vmatpush.msra.mxu0 %v867
        %986 = vmatpush.msra.mxu0 %v863
        %987 = vmatpush.msra.mxu0 %v859
        %988 = vmatpush.msra.mxu0 %v855
        %989 = vmatpush.msra.mxu0 %v851
        %990 = vmatpush.msra.mxu0 %v847
        %991 = vmatpush.msra.mxu0 %v843
        %992 = vmatpush.msra.mxu0 %v839
        %993 = vmatpush.msra.mxu0 %v835
        %994 = vmatpush.msra.mxu0 %v831
        %995 = vmatpush.msra.mxu0 %v827
        %996 = vmatpush.msra.mxu0 %v823
        %997 = vmatpush.msra.mxu0 %v819
        %998 = vmatpush.msra.mxu0 %v815
        %999 = vmatpush.msra.mxu0 %v811
        %1000 = vmatmul.f32.gmra.mxu0 %v743
        %v1001 = vpop.f32.mrf.mxu0
        %v1002 = vadd.f32 %v982, %v1001
        %1003 = vdwg.mxu0
        %1004 = vmatpush.msra.mxu0 %v808
        %1005 = vmatpush.msra.mxu0 %v804
        %1006 = vmatpush.msra.mxu0 %v800
        %1007 = vmatpush.msra.mxu0 %v796
        %1008 = vmatpush.msra.mxu0 %v792
        %1009 = vmatpush.msra.mxu0 %v788
        %1010 = vmatpush.msra.mxu0 %v784
        %1011 = vmatpush.msra.mxu0 %v780
        %1012 = vmatpush.msra.mxu0 %v776
        %1013 = vmatpush.msra.mxu0 %v772
        %1014 = vmatpush.msra.mxu0 %v768
        %1015 = vmatpush.msra.mxu0 %v764
        %1016 = vmatpush.msra.mxu0 %v760
        %1017 = vmatpush.msra.mxu0 %v756
        %1018 = vmatpush.msra.mxu0 %v752
        %1019 = vmatpush.msra.mxu0 %v748
        %1020 = vmatmul.f32.gmra.mxu0 %v873
        %v1021 = vpop.f32.mrf.mxu0
        %v1022 = vadd.f32 %v879, %v1021
        %1023 = vdwg.mxu0
        %1024 = vmatpush.msra.mxu0 %v872
        %1025 = vmatpush.msra.mxu0 %v868
        %1026 = vmatpush.msra.mxu0 %v864
        %1027 = vmatpush.msra.mxu0 %v860
        %1028 = vmatpush.msra.mxu0 %v856
        %1029 = vmatpush.msra.mxu0 %v852
        %1030 = vmatpush.msra.mxu0 %v848
        %1031 = vmatpush.msra.mxu0 %v844
        %1032 = vmatpush.msra.mxu0 %v840
        %1033 = vmatpush.msra.mxu0 %v836
        %1034 = vmatpush.msra.mxu0 %v832
        %1035 = vmatpush.msra.mxu0 %v828
        %1036 = vmatpush.msra.mxu0 %v824
        %1037 = vmatpush.msra.mxu0 %v820
        %1038 = vmatpush.msra.mxu0 %v816
        %1039 = vmatpush.msra.mxu0 %v812
        %1040 = vmatmul.f32.gmra.mxu0 %v743
        %v1041 = vpop.f32.mrf.mxu0
        %v1042 = vadd.f32 %v1022, %v1041
        %1043 = vdwg.mxu0
        %v1044 = vxor.u32 %v922, 2147483648
        %v1045 = vmul.f32 %v1044, 1.442695
        %v1046 = vpow.pop %v1045
        %v1047 = vadd.f32 %v1046, 1.0
        %v1048 = vrcp.pop %v1047
        %v1049 = vmul.f32 %v1047, %v1048
        %v1050 = vsub.f32 1.0, %v1049
        %v1051 = vmul.f32 %v1048, %v1050
        %v1052 = vadd.f32 %v1048, %v1051
        %vm1053 = vweird.f32 %v1047
        %vm1054 = vweird.f32 %v1048
        %vm1055 = vmor %vm1053, %vm1054
        %v1056 = vsel %vm1055, %v1048, %v1052
        %v1057 = vand.u32 2147483647, %v1047
        %vm1058 = vcmp.eq.f32.partialorder %v1057, 8.507059e+37
        %v1059 = vand.u32 %v1047, 2147483648
        %v1060 = vor.u32 1.1754944e-38, %v1059
        %v1061 = vsel %vm1058, %v1060, %v1056
        %v1062 = vmul.f32 1.0, %v1061
        %v1063 = vxor.u32 %v962, 2147483648
        %v1064 = vmul.f32 %v1063, 1.442695
        %v1065 = vpow.pop %v1064
        %v1066 = vadd.f32 %v1065, 1.0
        %v1067 = vrcp.pop %v1066
        %v1068 = vmul.f32 %v1066, %v1067
        %v1069 = vsub.f32 1.0, %v1068
        %v1070 = vmul.f32 %v1067, %v1069
        %v1071 = vadd.f32 %v1067, %v1070
        %vm1072 = vweird.f32 %v1066
        %vm1073 = vweird.f32 %v1067
        %vm1074 = vmor %vm1072, %vm1073
        %v1075 = vsel %vm1074, %v1067, %v1071
        %v1076 = vand.u32 2147483647, %v1066
        %vm1077 = vcmp.eq.f32.partialorder %v1076, 8.507059e+37
        %v1078 = vand.u32 %v1066, 2147483648
        %v1079 = vor.u32 1.1754944e-38, %v1078
        %v1080 = vsel %vm1077, %v1079, %v1075
        %v1081 = vmul.f32 1.0, %v1080
        %v1082 = vtanh.pop %v1002
        %v1083 = vxor.u32 %v1042, 2147483648
        %v1084 = vmul.f32 %v1083, 1.442695
        %v1085 = vpow.pop %v1084
        %v1086 = vadd.f32 %v1085, 1.0
        %v1087 = vrcp.pop %v1086
        %v1088 = vmul.f32 %v1086, %v1087
        %v1089 = vsub.f32 1.0, %v1088
        %v1090 = vmul.f32 %v1087, %v1089
        %v1091 = vadd.f32 %v1087, %v1090
        %vm1092 = vweird.f32 %v1086
        %vm1093 = vweird.f32 %v1087
        %vm1094 = vmor %vm1092, %vm1093
        %v1095 = vsel %vm1094, %v1087, %v1091
        %v1096 = vand.u32 2147483647, %v1086
        %vm1097 = vcmp.eq.f32.partialorder %v1096, 8.507059e+37
        %v1098 = vand.u32 %v1086, 2147483648
        %v1099 = vor.u32 1.1754944e-38, %v1098
        %v1100 = vsel %vm1097, %v1099, %v1095
        %v1101 = vmul.f32 1.0, %v1100
        %v1102 = vmul.f32 %v1081, %v744
        %v1103 = vmul.f32 %v1062, %v1082
        %v1104 = vadd.f32 %v1102, %v1103
        %v1105 = vtanh.pop %v1104
        %v1106 = vmul.f32 %v1101, %v1105
        %1107 = vst [vmem:[%s407] sm:$0xff] %v1106
        %1108 = vst [vmem:[%s411] sm:$0xff] %v1104
        %1109 = vst [vmem:[#allocation2] sm:$0xff] %v1106
        %p1110 = scmp.eq.s32.totalorder %s34, 1
        // Predicated region
        $region297: #{decoder_step.1} parent=43 // pred_check
          %p1111 = pneg %p1110
        $region298: #{decoder_step.1} parent=43 // pred_check_branch
          %1113 = sbr.rel (%p1111) target = $region300
        $region299: #{decoder_step.1} parent=43 // pred_region
          %v1114 = vld [vmem:[#allocation8] sm:$0xff]
          %v1115 = vld [vmem:[#allocation8 + $0x8] sm:$0xff]
          %v1116 = vld [vmem:[#allocation8 + $0x10] sm:$0xff]
          %v1117 = vld [vmem:[#allocation8 + $0x18] sm:$0xff]
          %v1118 = vld [vmem:[#allocation8 + $0x20] sm:$0xff]
          %v1119 = vld [vmem:[#allocation8 + $0x28] sm:$0xff]
          %v1120 = vld [vmem:[#allocation8 + $0x30] sm:$0xff]
          %v1121 = vld [vmem:[#allocation8 + $0x38] sm:$0xff]
          %v1122 = vld [vmem:[#allocation8 + $0x40] sm:$0xff]
          %v1123 = vld [vmem:[#allocation8 + $0x48] sm:$0xff]
          %v1124 = vld [vmem:[#allocation8 + $0x50] sm:$0xff]
          %v1125 = vld [vmem:[#allocation8 + $0x58] sm:$0xff]
          %v1126 = vld [vmem:[#allocation8 + $0x60] sm:$0xff]
          %v1127 = vld [vmem:[#allocation8 + $0x68] sm:$0xff]
          %v1128 = vld [vmem:[#allocation8 + $0x70] sm:$0xff]
          %v1129 = vld [vmem:[#allocation8 + $0x78] sm:$0xff]
          %v1130 = vld [vmem:[%s7] sm:$0x1]
          %v1132 = vperm.slane %v1130, 0
          %1134 = vmatpush.msra.mxu0 %v1129
          %1135 = vmatpush.msra.mxu0 %v1128
          %1136 = vmatpush.msra.mxu0 %v1127
          %1137 = vmatpush.msra.mxu0 %v1126
          %1138 = vmatpush.msra.mxu0 %v1125
          %1139 = vmatpush.msra.mxu0 %v1124
          %1140 = vmatpush.msra.mxu0 %v1123
          %1141 = vmatpush.msra.mxu0 %v1122
          %1142 = vmatpush.msra.mxu0 %v1121
          %1143 = vmatpush.msra.mxu0 %v1120
          %1144 = vmatpush.msra.mxu0 %v1119
          %1145 = vmatpush.msra.mxu0 %v1118
          %1146 = vmatpush.msra.mxu0 %v1117
          %1147 = vmatpush.msra.mxu0 %v1116
          %1148 = vmatpush.msra.mxu0 %v1115
          %1149 = vmatpush.msra.mxu0 %v1114
          %1150 = vmatmul.f32.gmra.mxu0 %v1106
          %v1151 = vpop.f32.mrf.mxu0
          %v1152 = vadd.f32 %v1132, %v1151
          %1153 = vdwg.mxu0
          %1154 = vst [vmem:[%s8] sm:$0xff] %v1152
        $region300: #{decoder_step.1} parent=43 // pred_fallthru
          _
        %p1155 = scmp.lt.s32.totalorder %s34, 1
        %s1156 = scalar_select %p1155, %s34, 1
        %s1157 = smul.addr %s1156, 8
        %s1158 = scalar_lea.vmem %s9, %s1157
        %p1159 = scmp.lt.s32.totalorder %s34, 1
        %s1160 = scalar_select %p1159, %s34, 1
        %s1161 = smul.addr %s1160, 8
        %s1162 = scalar_lea.vmem %s10, %s1161
        // Predicated region
        $region301: #{decoder_step.1} parent=43 // pred_check
          %p1163 = pneg %p193
        $region302: #{decoder_step.1} parent=43 // pred_check_branch
          %1165 = sbr.rel (%p1163) target = $region304
        $region303: #{decoder_step.1} parent=43 // pred_region
          _
        $region304: #{decoder_step.1} parent=43 // pred_fallthru
          _
        // Predicated region
        $region305: #{decoder_step.1} parent=43 // pred_check
          %p1166 = pneg %p219
        $region306: #{decoder_step.1} parent=43 // pred_check_branch
          %1168 = sbr.rel (%p1166) target = $region308
        $region307: #{decoder_step.1} parent=43 // pred_region
          _
        $region308: #{decoder_step.1} parent=43 // pred_fallthru
          _
        // Predicated region
        $region309: #{decoder_step.1} parent=43 // pred_check
          %p1169 = pneg %p245
        $region310: #{decoder_step.1} parent=43 // pred_check_branch
          %1171 = sbr.rel (%p1169) target = $region312
        $region311: #{decoder_step.1} parent=43 // pred_region
          _
        $region312: #{decoder_step.1} parent=43 // pred_fallthru
          _
        // Predicated region
        $region313: #{decoder_step.1} parent=43 // pred_check
          %p1172 = pneg %p193
        $region314: #{decoder_step.1} parent=43 // pred_check_branch
          %1174 = sbr.rel (%p1172) target = $region316
        $region315: #{decoder_step.1} parent=43 // pred_region
          _
        $region316: #{decoder_step.1} parent=43 // pred_fallthru
          _
      $region44: #{decoder_step.1} parent=5 // pred_fallthru
        _
      %p1175 = scmp.le.s32.totalorder 2, %s29
      // Predicated region
      $region317: #{decoder_step.1} parent=5 // pred_check
        %p1176 = pneg %p1175
      $region318: #{decoder_step.1} parent=5 // pred_check_branch
        %1178 = sbr.rel (%p1176) target = $region320
      $region319: #{decoder_step.1} parent=5 // pred_region
        %s1179 = ssub.s32 %s29, 2
        // Predicated region
        $region321: #{decoder_step.1} parent=319 // pred_check
          %p1180 = pneg %p225
        $region322: #{decoder_step.1} parent=319 // pred_check_branch
          %1182 = sbr.rel (%p1180) target = $region324
        $region323: #{decoder_step.1} parent=319 // pred_region
          %p1183 = scmp.lt.s32.totalorder %s35, 1
          %s1184 = scalar_select %p1183, %s35, 1
          %s1185 = smul.addr %s1184, 8
          %s1186 = scalar_lea.vmem %s9, %s1185
        $region324: #{decoder_step.1} parent=319 // pred_fallthru
          _
        // Predicated region
        $region325: #{decoder_step.1} parent=319 // pred_check
          %p1187 = pneg %p251
        $region326: #{decoder_step.1} parent=319 // pred_check_branch
          %1189 = sbr.rel (%p1187) target = $region328
        $region327: #{decoder_step.1} parent=319 // pred_region
          %p1190 = scmp.lt.s32.totalorder %s35, 1
          %s1191 = scalar_select %p1190, %s35, 1
          %s1192 = smul.addr %s1191, 8
          %s1193 = scalar_lea.vmem %s10, %s1192
        $region328: #{decoder_step.1} parent=319 // pred_fallthru
          _
      $region320: #{decoder_step.1} parent=5 // pred_fallthru
        _
    $region6: #{decoder_step.1} parent=1 // loop_footer
      %s33 = sadd.s32 1, %s29
    $region7: #{decoder_step.1} parent=1 // loop_footer_branch
      %28 = sbr.rel target = $region3
    $region8: #{decoder_step.1} parent=1 // loop_exit
      _
    %1194 = vsyncpa [#allocation7], 1
    %s1195 = scalar_lea.sflag [#allocation7], 1
    %1196 = vsyncpa %s1195, 1
    %1197 = vsyncpa [#allocation9], 1
  %1198 = vsyncmov [#allocation3]
  %s1199 = vpop.sfrf %1198
  %p1200 = scmp.eq.s32.totalorder %s1199, 0
  %p1201 = pneg %p1200
  %1203 = shalt.err (%p1201)
  %s1204 = scalar_lea.sflag [#allocation3], 1
  %1205 = vsyncmov %s1204
  %s1206 = vpop.sfrf %1205
  %p1207 = scmp.eq.s32.totalorder %s1206, 0
  %p1208 = pneg %p1207
  %1210 = shalt.err (%p1208)
  %s1211 = scalar_lea.sflag [#allocation3], 2
  %1212 = vsyncmov %s1211
  %s1213 = vpop.sfrf %1212
  %p1214 = scmp.eq.s32.totalorder %s1213, 0
  %p1215 = pneg %p1214
  %1217 = shalt.err (%p1215)
  %s1218 = scalar_lea.sflag [#allocation3], 3
  %1219 = vsyncmov %s1218
  %s1220 = vpop.sfrf %1219
  %p1221 = scmp.eq.s32.totalorder %s1220, 0
  %p1222 = pneg %p1221
  %1224 = shalt.err (%p1222)
  %s1225 = scalar_lea.sflag [#allocation3], 4
  %1226 = vsyncmov %s1225
  %s1227 = vpop.sfrf %1226
  %p1228 = scmp.eq.s32.totalorder %s1227, 0
  %p1229 = pneg %p1228
  %1231 = shalt.err (%p1229)
  %s1232 = scalar_lea.sflag [#allocation3], 5
  %1233 = vsyncmov %s1232
  %s1234 = vpop.sfrf %1233
  %p1235 = scmp.eq.s32.totalorder %s1234, 0
  %p1236 = pneg %p1235
  %1238 = shalt.err (%p1236)
  %s1239 = scalar_lea.sflag [#allocation3], 6
  %1240 = vsyncmov %s1239
  %s1241 = vpop.sfrf %1240
  %p1242 = scmp.eq.s32.totalorder %s1241, 0
  %p1243 = pneg %p1242
  %1245 = shalt.err (%p1243)
  %s1246 = scalar_lea.sflag [#allocation3], 7
  %1247 = vsyncmov %s1246
  %s1248 = vpop.sfrf %1247
  %p1249 = scmp.eq.s32.totalorder %s1248, 0
  %p1250 = pneg %p1249
  %1252 = shalt.err (%p1250)

</llo_original>
